<compile_context>
chip_gen: v7x
topology: tpu7x:2x2x1
jax: 0.10.0
libtpu: 0.0.40
codegen_flags: <defaults>
</compile_context>

<pallas_src>
import jax
import jax.numpy as jnp
import numpy as np
from jax.experimental import pallas as pl
from jax.experimental.pallas import tpu as pltpu


def _make_lstm_mlp_kernel(T, B, H, L, HP):
    """Wavefront-fused multi-layer LSTM + output-MLP kernel, static (T,B,H,L).

    Ref shapes:
      x_ref    : (T*B, 1)        flattened time-major input (input dim = 1)
      wih0_ref : (1, 4H)         layer-0 input weights (transposed)
      wband_ref: (L*H, L*4H)     block-banded fused recurrent/input weights
      brow_ref : (1, L*4H)       per-layer b_ih + b_hh, concatenated on lanes
      wout_ref : (1, 1, H)       output-head weights (row)
      bout_ref : (1, 1)          output-head bias
      out_ref  : (T, B)          sigmoid(Linear(h_top))      [lane-dense]
      hn_ref   : (L, B, HP)      final h, lane-padded to HP (>=128)
      cn_ref   : (L, B, HP)      final c, lane-padded to HP
      hs_ref   : (T, B, H)       VMEM scratch: streamed top-layer h
      add_ref  : (T*B, L*4H)     VMEM scratch: hoisted input-proj + biases
    """
    G = 4 * H

    def kernel(x_ref, wih0_ref, wband_ref, brow_ref, wout_ref, bout_ref,
               out_ref, hn_ref, cn_ref, hs_ref, add_ref):
        # ---- hoisted pre-computation (off the recurrence critical path) ----
        # Layer-0 input projection (input dim == 1 -> broadcast multiply),
        # widened to the full L*4H gate-lane slab with all biases folded in.
        gin0 = x_ref[...] * wih0_ref[...]                       # (T*B, 4H)
        if L > 1:
            gin0 = jnp.concatenate(
                [gin0, jnp.zeros((T * B, (L - 1) * G), jnp.float32)], axis=1)
        add_ref[...] = gin0 + brow_ref[...]                     # (T*B, L*4H)

        wband = wband_ref[...]                                  # (L*H, L*4H)
        brow = brow_ref[...]                                    # (1, L*4H)

        zeros = jnp.zeros((B, H), jnp.float32)                  # hid=None -> 0
        h = [zeros] * L
        c = [zeros] * L

        # ---- wavefront recurrence: one block-banded dot per wave ----
        # Wave w updates layer l at timestep t = w - l for every in-range l.
        for w in range(T + L - 1):
            lhs = h[0] if L == 1 else jnp.concatenate(h, axis=1)   # (B, L*H)
            dot = jnp.dot(lhs, wband, preferred_element_type=jnp.float32)
            if w < T:                       # layer-0 lanes need x-proj + bias
                gates = dot + add_ref[w * B:(w + 1) * B, :]
            else:                           # drain waves: layer 0 inactive
                gates = dot + brow
            # one sigmoid + one tanh over the whole (B, L*4H) gate slab
            sig = jax.nn.sigmoid(gates)
            tnh = jnp.tanh(gates)
            for l in range(L):
                t = w - l
                if not 0 <= t < T:          # static skip at wavefront edges
                    continue
                base = l * G                # PyTorch gate order: i, f, g, o
                i_g = sig[:, base:base + H]
                f_g = sig[:, base + H:base + 2 * H]
                g_g = tnh[:, base + 2 * H:base + 3 * H]
                o_g = sig[:, base + 3 * H:base + 4 * H]
                c_new = f_g * c[l] + i_g * g_g
                h_new = o_g * jnp.tanh(c_new)
                c[l] = c_new
                h[l] = h_new
                if l == L - 1:
                    # stream top-layer h to the staging scratch (overlaps with
                    # subsequent waves; consumed by the hoisted output head)
                    hs_ref[t] = h_new

        # ---- hoisted output head: Linear(H,1)+Sigmoid, lane-dense store ----
        hs = hs_ref[...]                                        # (T, B, H)
        y = jnp.sum(hs * wout_ref[...], axis=-1)                # (T, B)
        out_ref[...] = jax.nn.sigmoid(y + bout_ref[...])

        # ---- final states, written once, lane-padded to HP ----
        pad = HP - H
        for l in range(L):
            if pad:
                zpad = jnp.zeros((B, pad), jnp.float32)
                hn_ref[l] = jnp.concatenate([h[l], zpad], axis=1)
                cn_ref[l] = jnp.concatenate([c[l], zpad], axis=1)
            else:
                hn_ref[l] = h[l]
                cn_ref[l] = c[l]

    return kernel


def optimizer_gene_forward(inp, params):
    """inp: (T, B, 1) float32.  Returns (out (T,B,1), (h_n, c_n) each (L,B,H)).

    TODO(synk): non-None initial state `hid` is not plumbed through (the module
    is always called with hid=None in H2O_MaxCut; zero initial state assumed).
    """
    T, B, _ = inp.shape
    w_ih, w_hh = params["w_ih"], params["w_hh"]
    b_ih, b_hh = params["b_ih"], params["b_hh"]
    L = len(w_ih)
    H = w_hh[0].shape[1]
    G = 4 * H
    HP = ((H + 127) // 128) * 128            # lane-dense state padding

    # pad batch to the native 8-sublane tile
    B_pad = max(8, ((B + 7) // 8) * 8)
    if B_pad != B:
        inp_p = jnp.concatenate(
            [inp, jnp.zeros((T, B_pad - B, 1), inp.dtype)], axis=1)
    else:
        inp_p = inp
    x_flat = inp_p.astype(jnp.float32).reshape(T * B_pad, 1)

    # kernel-layout weights (x @ W convention)
    wih0 = w_ih[0].T.astype(jnp.float32)                        # (1, 4H)
    # block-banded fused weight: one dot advances the whole layer stack
    wband = jnp.zeros((L * H, L * G), jnp.float32)
    wband = wband.at[0:H, 0:G].set(w_hh[0].T)
    for l in range(1, L):
        wband = wband.at[(l - 1) * H:l * H, l * G:(l + 1) * G].set(w_ih[l].T)
        wband = wband.at[l * H:(l + 1) * H, l * G:(l + 1) * G].set(w_hh[l].T)
    brow = jnp.concatenate([b_ih[l] + b_hh[l] for l in range(L)]
                           ).reshape(1, L * G).astype(jnp.float32)
    wout = params["w_out"].reshape(1, 1, H).astype(jnp.float32)  # (1,1,H)
    bout = params["b_out"].reshape(1, 1).astype(jnp.float32)     # (1,1)

    vmem = pl.BlockSpec(memory_space=pltpu.MemorySpace.VMEM)
    out_shapes = (
        jax.ShapeDtypeStruct((T, B_pad), jnp.float32),           # out (lane-dense)
        jax.ShapeDtypeStruct((L, B_pad, HP), jnp.float32),       # h_n (padded)
        jax.ShapeDtypeStruct((L, B_pad, HP), jnp.float32),       # c_n (padded)
    )
    kernel = _make_lstm_mlp_kernel(T, B_pad, H, L, HP)
    out2d, hn, cn = pl.pallas_call(
        kernel,
        out_shape=out_shapes,
        in_specs=[vmem] * 6,
        out_specs=(vmem, vmem, vmem),
        scratch_shapes=[
            pltpu.VMEM((T, B_pad, H), jnp.float32),      # streamed top-layer h
            pltpu.VMEM((T * B_pad, L * G), jnp.float32),  # hoisted additive slab
        ],
    )(x_flat, wih0, wband, brow, wout, bout)

    out = out2d[:, :B, None]
    return out, (hn[:, :B, :H], cn[:, :B, :H])


def init_params(key, mid_dim, num_layers):
    """Deterministic synthetic parameters, PyTorch-style U(-1/sqrt(H), 1/sqrt(H))."""
    H, L = mid_dim, num_layers
    k = 1.0 / np.sqrt(H)
    keys = jax.random.split(key, 4 * L + 2)
    u = lambda kk, shape: jax.random.uniform(kk, shape, jnp.float32, -k, k)
    w_ih = [u(keys[l], (4 * H, 1 if l == 0 else H)) for l in range(L)]
    w_hh = [u(keys[L + l], (4 * H, H)) for l in range(L)]
    b_ih = [u(keys[2 * L + l], (4 * H,)) for l in range(L)]
    b_hh = [u(keys[3 * L + l], (4 * H,)) for l in range(L)]
    w_out = u(keys[4 * L], (1, H))
    b_out = u(keys[4 * L + 1], (1,))
    return dict(w_ih=w_ih, w_hh=w_hh, b_ih=b_ih, b_hh=b_hh,
                w_out=w_out, b_out=b_out)


def reference_forward(inp, params):
    """Pure-JAX reference of the same math (PyTorch LSTM + Linear + Sigmoid)."""
    T, B, _ = inp.shape
    w_ih, w_hh = params["w_ih"], params["w_hh"]
    b_ih, b_hh = params["b_ih"], params["b_hh"]
    L = len(w_ih)
    H = w_hh[0].shape[1]
    h = [jnp.zeros((B, H), jnp.float32) for _ in range(L)]
    c = [jnp.zeros((B, H), jnp.float32) for _ in range(L)]
    outs = []
    for t in range(T):
        layer_in = inp[t]
        for l in range(L):
            gates = (layer_in @ w_ih[l].T + b_ih[l]
                     + h[l] @ w_hh[l].T + b_hh[l])
            i_g = jax.nn.sigmoid(gates[:, 0:H])
            f_g = jax.nn.sigmoid(gates[:, H:2 * H])
            g_g = jnp.tanh(gates[:, 2 * H:3 * H])
            o_g = jax.nn.sigmoid(gates[:, 3 * H:4 * H])
            c[l] = f_g * c[l] + i_g * g_g
            h[l] = o_g * jnp.tanh(c[l])
            layer_in = h[l]
        outs.append(jax.nn.sigmoid(layer_in @ params["w_out"].T + params["b_out"]))
    return jnp.stack(outs), jnp.stack(h), jnp.stack(c)


if __name__ == "__main__":
    # Module config: OptimizerGene(inp_dim=1, mid_dim=32, out_dim=1, num_layers=2)
    seq_len, batch, mid_dim, num_layers = 8, 4, 32, 2

    key = jax.random.PRNGKey(0)
    k_inp, k_par = jax.random.split(key)
    inp = jax.random.normal(k_inp, (seq_len, batch, 1), jnp.float32)
    params = init_params(k_par, mid_dim, num_layers)

    out, (h_n, c_n) = optimizer_gene_forward(inp, params)
    jax.block_until_ready((out, h_n, c_n))

    ref_out, ref_h, ref_c = reference_forward(inp, params)
    assert np.allclose(np.asarray(out), np.asarray(ref_out), atol=1e-4)
    assert np.allclose(np.asarray(h_n), np.asarray(ref_h), atol=1e-4)
    assert np.allclose(np.asarray(c_n), np.asarray(ref_c), atol=1e-4)

    print("KERNEL_OK")
</pallas_src>

<mosaic_0001>
module attributes {stable_mosaic.version = 11 : i64} {
  func.func @kernel(%arg0: memref<64x1xf32, #tpu.memory_space<vmem>>, %arg1: memref<1x128xf32, #tpu.memory_space<vmem>>, %arg2: memref<64x256xf32, #tpu.memory_space<vmem>>, %arg3: memref<1x256xf32, #tpu.memory_space<vmem>>, %arg4: memref<1x1x32xf32, #tpu.memory_space<vmem>>, %arg5: memref<1x1xf32, #tpu.memory_space<vmem>>, %arg6: memref<8x8xf32, #tpu.memory_space<vmem>>, %arg7: memref<2x8x128xf32, #tpu.memory_space<vmem>>, %arg8: memref<2x8x128xf32, #tpu.memory_space<vmem>>, %arg9: memref<8x8x32xf32, #tpu.memory_space<vmem>>, %arg10: memref<64x256xf32, #tpu.memory_space<vmem>>) attributes {dimension_semantics = [], scalar_prefetch = 0 : i64, scratch_operands = 2 : i64, tpu.core_type = #tpu.core_type<tc>} {
    %c0 = arith.constant 0 : index
    %c0_0 = arith.constant 0 : index
    %0 = vector.load %arg0[%c0, %c0_0] : memref<64x1xf32, #tpu.memory_space<vmem>>, vector<64x1xf32>
    %c0_1 = arith.constant 0 : index
    %c0_2 = arith.constant 0 : index
    %1 = vector.load %arg1[%c0_1, %c0_2] : memref<1x128xf32, #tpu.memory_space<vmem>>, vector<1x128xf32>
    %2 = vector.broadcast %0 : vector<64x1xf32> to vector<64x128xf32>
    %3 = vector.broadcast %1 : vector<1x128xf32> to vector<64x128xf32>
    %4 = arith.mulf %2, %3 : vector<64x128xf32>
    %cst = arith.constant 0.000000e+00 : f32
    %5 = vector.broadcast %cst : f32 to vector<64x128xf32>
    %6 = tpu.concatenate %4, %5 in 1 : vector<64x128xf32>, vector<64x128xf32> -> vector<64x256xf32>
    %c0_3 = arith.constant 0 : index
    %c0_4 = arith.constant 0 : index
    %7 = vector.load %arg3[%c0_3, %c0_4] : memref<1x256xf32, #tpu.memory_space<vmem>>, vector<1x256xf32>
    %8 = vector.broadcast %7 : vector<1x256xf32> to vector<64x256xf32>
    %9 = arith.addf %6, %8 : vector<64x256xf32>
    %c0_5 = arith.constant 0 : index
    %c0_6 = arith.constant 0 : index
    %10 = vector.load %arg10[%c0_5, %c0_6] : memref<64x256xf32, #tpu.memory_space<vmem>>, vector<64x256xf32>
    tpu.vector_store %arg10[%c0_5, %c0_6], %9 {strides = array<i32>} : memref<64x256xf32, #tpu.memory_space<vmem>>, vector<64x256xf32>,
    %c0_7 = arith.constant 0 : index
    %c0_8 = arith.constant 0 : index
    %11 = vector.load %arg2[%c0_7, %c0_8] : memref<64x256xf32, #tpu.memory_space<vmem>>, vector<64x256xf32>
    %c0_9 = arith.constant 0 : index
    %c0_10 = arith.constant 0 : index
    %12 = vector.load %arg3[%c0_9, %c0_10] : memref<1x256xf32, #tpu.memory_space<vmem>>, vector<1x256xf32>
    %cst_11 = arith.constant 0.000000e+00 : f32
    %13 = vector.broadcast %cst_11 : f32 to vector<8x32xf32>
    %14 = tpu.concatenate %13, %13 in 1 : vector<8x32xf32>, vector<8x32xf32> -> vector<8x64xf32>
    %cst_12 = arith.constant dense<0.000000e+00> : vector<8x256xf32>
    %15 = tpu.matmul %14, %11, %cst_12 {dimension_numbers = #tpu.dot_dimension_numbers<[1], [0], [0], [1], [0, 0, 1, 1], [], []>} : vector<8x64xf32>, vector<64x256xf32>, vector<8x256xf32> -> vector<8x256xf32>
    %c0_13 = arith.constant 0 : index
    %c0_14 = arith.constant 0 : index
    %16 = vector.load %arg10[%c0_13, %c0_14] : memref<64x256xf32, #tpu.memory_space<vmem>>, vector<8x256xf32>
    %17 = arith.addf %15, %16 : vector<8x256xf32>
    %18 = arith.negf %17 : vector<8x256xf32>
    %19 = math.exp %18 : vector<8x256xf32>
    %cst_15 = arith.constant 1.000000e+00 : f32
    %20 = vector.broadcast %cst_15 : f32 to vector<8x256xf32>
    %21 = arith.addf %20, %19 : vector<8x256xf32>
    %22 = arith.divf %20, %21 : vector<8x256xf32>
    %23 = math.tanh %17 : vector<8x256xf32>
    %24 = vector.extract_strided_slice %22 {offsets = [0, 0], sizes = [8, 32], strides = [1, 1]} : vector<8x256xf32> to vector<8x32xf32>
    %25 = vector.extract_strided_slice %22 {offsets = [0, 32], sizes = [8, 32], strides = [1, 1]} : vector<8x256xf32> to vector<8x32xf32>
    %26 = vector.extract_strided_slice %23 {offsets = [0, 64], sizes = [8, 32], strides = [1, 1]} : vector<8x256xf32> to vector<8x32xf32>
    %27 = vector.extract_strided_slice %22 {offsets = [0, 96], sizes = [8, 32], strides = [1, 1]} : vector<8x256xf32> to vector<8x32xf32>
    %28 = arith.mulf %25, %13 : vector<8x32xf32>
    %29 = arith.mulf %24, %26 : vector<8x32xf32>
    %30 = arith.addf %28, %29 : vector<8x32xf32>
    %31 = math.tanh %30 : vector<8x32xf32>
    %32 = arith.mulf %27, %31 : vector<8x32xf32>
    %33 = tpu.concatenate %32, %13 in 1 : vector<8x32xf32>, vector<8x32xf32> -> vector<8x64xf32>
    %cst_16 = arith.constant dense<0.000000e+00> : vector<8x256xf32>
    %34 = tpu.matmul %33, %11, %cst_16 {dimension_numbers = #tpu.dot_dimension_numbers<[1], [0], [0], [1], [0, 0, 1, 1], [], []>} : vector<8x64xf32>, vector<64x256xf32>, vector<8x256xf32> -> vector<8x256xf32>
    %c8 = arith.constant 8 : index
    %c0_17 = arith.constant 0 : index
    %35 = vector.load %arg10[%c8, %c0_17] : memref<64x256xf32, #tpu.memory_space<vmem>>, vector<8x256xf32>
    %36 = arith.addf %34, %35 : vector<8x256xf32>
    %37 = arith.negf %36 : vector<8x256xf32>
    %38 = math.exp %37 : vector<8x256xf32>
    %cst_18 = arith.constant 1.000000e+00 : f32
    %39 = vector.broadcast %cst_18 : f32 to vector<8x256xf32>
    %40 = arith.addf %39, %38 : vector<8x256xf32>
    %41 = arith.divf %39, %40 : vector<8x256xf32>
    %42 = math.tanh %36 : vector<8x256xf32>
    %43 = vector.extract_strided_slice %41 {offsets = [0, 0], sizes = [8, 32], strides = [1, 1]} : vector<8x256xf32> to vector<8x32xf32>
    %44 = vector.extract_strided_slice %41 {offsets = [0, 32], sizes = [8, 32], strides = [1, 1]} : vector<8x256xf32> to vector<8x32xf32>
    %45 = vector.extract_strided_slice %42 {offsets = [0, 64], sizes = [8, 32], strides = [1, 1]} : vector<8x256xf32> to vector<8x32xf32>
    %46 = vector.extract_strided_slice %41 {offsets = [0, 96], sizes = [8, 32], strides = [1, 1]} : vector<8x256xf32> to vector<8x32xf32>
    %47 = arith.mulf %44, %30 : vector<8x32xf32>
    %48 = arith.mulf %43, %45 : vector<8x32xf32>
    %49 = arith.addf %47, %48 : vector<8x32xf32>
    %50 = math.tanh %49 : vector<8x32xf32>
    %51 = arith.mulf %46, %50 : vector<8x32xf32>
    %52 = vector.extract_strided_slice %41 {offsets = [0, 128], sizes = [8, 32], strides = [1, 1]} : vector<8x256xf32> to vector<8x32xf32>
    %53 = vector.extract_strided_slice %41 {offsets = [0, 160], sizes = [8, 32], strides = [1, 1]} : vector<8x256xf32> to vector<8x32xf32>
    %54 = vector.extract_strided_slice %42 {offsets = [0, 192], sizes = [8, 32], strides = [1, 1]} : vector<8x256xf32> to vector<8x32xf32>
    %55 = vector.extract_strided_slice %41 {offsets = [0, 224], sizes = [8, 32], strides = [1, 1]} : vector<8x256xf32> to vector<8x32xf32>
    %56 = arith.mulf %53, %13 : vector<8x32xf32>
    %57 = arith.mulf %52, %54 : vector<8x32xf32>
    %58 = arith.addf %56, %57 : vector<8x32xf32>
    %59 = math.tanh %58 : vector<8x32xf32>
    %60 = arith.mulf %55, %59 : vector<8x32xf32>
    %c0_19 = arith.constant 0 : index
    %c0_20 = arith.constant 0 : index
    %c0_21 = arith.constant 0 : index
    %61 = vector.load %arg9[%c0_19, %c0_20, %c0_21] : memref<8x8x32xf32, #tpu.memory_space<vmem>>, vector<1x8x32xf32>
    %62 = vector.shape_cast %61 : vector<1x8x32xf32> to vector<8x32xf32>
    %63 = vector.shape_cast %60 : vector<8x32xf32> to vector<1x8x32xf32>
    tpu.vector_store %arg9[%c0_19, %c0_20, %c0_21], %63 {strides = array<i32>} : memref<8x8x32xf32, #tpu.memory_space<vmem>>, vector<1x8x32xf32>,
    %64 = tpu.concatenate %51, %60 in 1 : vector<8x32xf32>, vector<8x32xf32> -> vector<8x64xf32>
    %cst_22 = arith.constant dense<0.000000e+00> : vector<8x256xf32>
    %65 = tpu.matmul %64, %11, %cst_22 {dimension_numbers = #tpu.dot_dimension_numbers<[1], [0], [0], [1], [0, 0, 1, 1], [], []>} : vector<8x64xf32>, vector<64x256xf32>, vector<8x256xf32> -> vector<8x256xf32>
    %c16 = arith.constant 16 : index
    %c0_23 = arith.constant 0 : index
    %66 = vector.load %arg10[%c16, %c0_23] : memref<64x256xf32, #tpu.memory_space<vmem>>, vector<8x256xf32>
    %67 = arith.addf %65, %66 : vector<8x256xf32>
    %68 = arith.negf %67 : vector<8x256xf32>
    %69 = math.exp %68 : vector<8x256xf32>
    %cst_24 = arith.constant 1.000000e+00 : f32
    %70 = vector.broadcast %cst_24 : f32 to vector<8x256xf32>
    %71 = arith.addf %70, %69 : vector<8x256xf32>
    %72 = arith.divf %70, %71 : vector<8x256xf32>
    %73 = math.tanh %67 : vector<8x256xf32>
    %74 = vector.extract_strided_slice %72 {offsets = [0, 0], sizes = [8, 32], strides = [1, 1]} : vector<8x256xf32> to vector<8x32xf32>
    %75 = vector.extract_strided_slice %72 {offsets = [0, 32], sizes = [8, 32], strides = [1, 1]} : vector<8x256xf32> to vector<8x32xf32>
    %76 = vector.extract_strided_slice %73 {offsets = [0, 64], sizes = [8, 32], strides = [1, 1]} : vector<8x256xf32> to vector<8x32xf32>
    %77 = vector.extract_strided_slice %72 {offsets = [0, 96], sizes = [8, 32], strides = [1, 1]} : vector<8x256xf32> to vector<8x32xf32>
    %78 = arith.mulf %75, %49 : vector<8x32xf32>
    %79 = arith.mulf %74, %76 : vector<8x32xf32>
    %80 = arith.addf %78, %79 : vector<8x32xf32>
    %81 = math.tanh %80 : vector<8x32xf32>
    %82 = arith.mulf %77, %81 : vector<8x32xf32>
    %83 = vector.extract_strided_slice %72 {offsets = [0, 128], sizes = [8, 32], strides = [1, 1]} : vector<8x256xf32> to vector<8x32xf32>
    %84 = vector.extract_strided_slice %72 {offsets = [0, 160], sizes = [8, 32], strides = [1, 1]} : vector<8x256xf32> to vector<8x32xf32>
    %85 = vector.extract_strided_slice %73 {offsets = [0, 192], sizes = [8, 32], strides = [1, 1]} : vector<8x256xf32> to vector<8x32xf32>
    %86 = vector.extract_strided_slice %72 {offsets = [0, 224], sizes = [8, 32], strides = [1, 1]} : vector<8x256xf32> to vector<8x32xf32>
    %87 = arith.mulf %84, %58 : vector<8x32xf32>
    %88 = arith.mulf %83, %85 : vector<8x32xf32>
    %89 = arith.addf %87, %88 : vector<8x32xf32>
    %90 = math.tanh %89 : vector<8x32xf32>
    %91 = arith.mulf %86, %90 : vector<8x32xf32>
    %c1 = arith.constant 1 : index
    %c0_25 = arith.constant 0 : index
    %c0_26 = arith.constant 0 : index
    %92 = vector.load %arg9[%c1, %c0_25, %c0_26] : memref<8x8x32xf32, #tpu.memory_space<vmem>>, vector<1x8x32xf32>
    %93 = vector.shape_cast %92 : vector<1x8x32xf32> to vector<8x32xf32>
    %94 = vector.shape_cast %91 : vector<8x32xf32> to vector<1x8x32xf32>
    tpu.vector_store %arg9[%c1, %c0_25, %c0_26], %94 {strides = array<i32>} : memref<8x8x32xf32, #tpu.memory_space<vmem>>, vector<1x8x32xf32>,
    %95 = tpu.concatenate %82, %91 in 1 : vector<8x32xf32>, vector<8x32xf32> -> vector<8x64xf32>
    %cst_27 = arith.constant dense<0.000000e+00> : vector<8x256xf32>
    %96 = tpu.matmul %95, %11, %cst_27 {dimension_numbers = #tpu.dot_dimension_numbers<[1], [0], [0], [1], [0, 0, 1, 1], [], []>} : vector<8x64xf32>, vector<64x256xf32>, vector<8x256xf32> -> vector<8x256xf32>
    %c24 = arith.constant 24 : index
    %c0_28 = arith.constant 0 : index
    %97 = vector.load %arg10[%c24, %c0_28] : memref<64x256xf32, #tpu.memory_space<vmem>>, vector<8x256xf32>
    %98 = arith.addf %96, %97 : vector<8x256xf32>
    %99 = arith.negf %98 : vector<8x256xf32>
    %100 = math.exp %99 : vector<8x256xf32>
    %cst_29 = arith.constant 1.000000e+00 : f32
    %101 = vector.broadcast %cst_29 : f32 to vector<8x256xf32>
    %102 = arith.addf %101, %100 : vector<8x256xf32>
    %103 = arith.divf %101, %102 : vector<8x256xf32>
    %104 = math.tanh %98 : vector<8x256xf32>
    %105 = vector.extract_strided_slice %103 {offsets = [0, 0], sizes = [8, 32], strides = [1, 1]} : vector<8x256xf32> to vector<8x32xf32>
    %106 = vector.extract_strided_slice %103 {offsets = [0, 32], sizes = [8, 32], strides = [1, 1]} : vector<8x256xf32> to vector<8x32xf32>
    %107 = vector.extract_strided_slice %104 {offsets = [0, 64], sizes = [8, 32], strides = [1, 1]} : vector<8x256xf32> to vector<8x32xf32>
    %108 = vector.extract_strided_slice %103 {offsets = [0, 96], sizes = [8, 32], strides = [1, 1]} : vector<8x256xf32> to vector<8x32xf32>
    %109 = arith.mulf %106, %80 : vector<8x32xf32>
    %110 = arith.mulf %105, %107 : vector<8x32xf32>
    %111 = arith.addf %109, %110 : vector<8x32xf32>
    %112 = math.tanh %111 : vector<8x32xf32>
    %113 = arith.mulf %108, %112 : vector<8x32xf32>
    %114 = vector.extract_strided_slice %103 {offsets = [0, 128], sizes = [8, 32], strides = [1, 1]} : vector<8x256xf32> to vector<8x32xf32>
    %115 = vector.extract_strided_slice %103 {offsets = [0, 160], sizes = [8, 32], strides = [1, 1]} : vector<8x256xf32> to vector<8x32xf32>
    %116 = vector.extract_strided_slice %104 {offsets = [0, 192], sizes = [8, 32], strides = [1, 1]} : vector<8x256xf32> to vector<8x32xf32>
    %117 = vector.extract_strided_slice %103 {offsets = [0, 224], sizes = [8, 32], strides = [1, 1]} : vector<8x256xf32> to vector<8x32xf32>
    %118 = arith.mulf %115, %89 : vector<8x32xf32>
    %119 = arith.mulf %114, %116 : vector<8x32xf32>
    %120 = arith.addf %118, %119 : vector<8x32xf32>
    %121 = math.tanh %120 : vector<8x32xf32>
    %122 = arith.mulf %117, %121 : vector<8x32xf32>
    %c2 = arith.constant 2 : index
    %c0_30 = arith.constant 0 : index
    %c0_31 = arith.constant 0 : index
    %123 = vector.load %arg9[%c2, %c0_30, %c0_31] : memref<8x8x32xf32, #tpu.memory_space<vmem>>, vector<1x8x32xf32>
    %124 = vector.shape_cast %123 : vector<1x8x32xf32> to vector<8x32xf32>
    %125 = vector.shape_cast %122 : vector<8x32xf32> to vector<1x8x32xf32>
    tpu.vector_store %arg9[%c2, %c0_30, %c0_31], %125 {strides = array<i32>} : memref<8x8x32xf32, #tpu.memory_space<vmem>>, vector<1x8x32xf32>,
    %126 = tpu.concatenate %113, %122 in 1 : vector<8x32xf32>, vector<8x32xf32> -> vector<8x64xf32>
    %cst_32 = arith.constant dense<0.000000e+00> : vector<8x256xf32>
    %127 = tpu.matmul %126, %11, %cst_32 {dimension_numbers = #tpu.dot_dimension_numbers<[1], [0], [0], [1], [0, 0, 1, 1], [], []>} : vector<8x64xf32>, vector<64x256xf32>, vector<8x256xf32> -> vector<8x256xf32>
    %c32 = arith.constant 32 : index
    %c0_33 = arith.constant 0 : index
    %128 = vector.load %arg10[%c32, %c0_33] : memref<64x256xf32, #tpu.memory_space<vmem>>, vector<8x256xf32>
    %129 = arith.addf %127, %128 : vector<8x256xf32>
    %130 = arith.negf %129 : vector<8x256xf32>
    %131 = math.exp %130 : vector<8x256xf32>
    %cst_34 = arith.constant 1.000000e+00 : f32
    %132 = vector.broadcast %cst_34 : f32 to vector<8x256xf32>
    %133 = arith.addf %132, %131 : vector<8x256xf32>
    %134 = arith.divf %132, %133 : vector<8x256xf32>
    %135 = math.tanh %129 : vector<8x256xf32>
    %136 = vector.extract_strided_slice %134 {offsets = [0, 0], sizes = [8, 32], strides = [1, 1]} : vector<8x256xf32> to vector<8x32xf32>
    %137 = vector.extract_strided_slice %134 {offsets = [0, 32], sizes = [8, 32], strides = [1, 1]} : vector<8x256xf32> to vector<8x32xf32>
    %138 = vector.extract_strided_slice %135 {offsets = [0, 64], sizes = [8, 32], strides = [1, 1]} : vector<8x256xf32> to vector<8x32xf32>
    %139 = vector.extract_strided_slice %134 {offsets = [0, 96], sizes = [8, 32], strides = [1, 1]} : vector<8x256xf32> to vector<8x32xf32>
    %140 = arith.mulf %137, %111 : vector<8x32xf32>
    %141 = arith.mulf %136, %138 : vector<8x32xf32>
    %142 = arith.addf %140, %141 : vector<8x32xf32>
    %143 = math.tanh %142 : vector<8x32xf32>
    %144 = arith.mulf %139, %143 : vector<8x32xf32>
    %145 = vector.extract_strided_slice %134 {offsets = [0, 128], sizes = [8, 32], strides = [1, 1]} : vector<8x256xf32> to vector<8x32xf32>
    %146 = vector.extract_strided_slice %134 {offsets = [0, 160], sizes = [8, 32], strides = [1, 1]} : vector<8x256xf32> to vector<8x32xf32>
    %147 = vector.extract_strided_slice %135 {offsets = [0, 192], sizes = [8, 32], strides = [1, 1]} : vector<8x256xf32> to vector<8x32xf32>
    %148 = vector.extract_strided_slice %134 {offsets = [0, 224], sizes = [8, 32], strides = [1, 1]} : vector<8x256xf32> to vector<8x32xf32>
    %149 = arith.mulf %146, %120 : vector<8x32xf32>
    %150 = arith.mulf %145, %147 : vector<8x32xf32>
    %151 = arith.addf %149, %150 : vector<8x32xf32>
    %152 = math.tanh %151 : vector<8x32xf32>
    %153 = arith.mulf %148, %152 : vector<8x32xf32>
    %c3 = arith.constant 3 : index
    %c0_35 = arith.constant 0 : index
    %c0_36 = arith.constant 0 : index
    %154 = vector.load %arg9[%c3, %c0_35, %c0_36] : memref<8x8x32xf32, #tpu.memory_space<vmem>>, vector<1x8x32xf32>
    %155 = vector.shape_cast %154 : vector<1x8x32xf32> to vector<8x32xf32>
    %156 = vector.shape_cast %153 : vector<8x32xf32> to vector<1x8x32xf32>
    tpu.vector_store %arg9[%c3, %c0_35, %c0_36], %156 {strides = array<i32>} : memref<8x8x32xf32, #tpu.memory_space<vmem>>, vector<1x8x32xf32>,
    %157 = tpu.concatenate %144, %153 in 1 : vector<8x32xf32>, vector<8x32xf32> -> vector<8x64xf32>
    %cst_37 = arith.constant dense<0.000000e+00> : vector<8x256xf32>
    %158 = tpu.matmul %157, %11, %cst_37 {dimension_numbers = #tpu.dot_dimension_numbers<[1], [0], [0], [1], [0, 0, 1, 1], [], []>} : vector<8x64xf32>, vector<64x256xf32>, vector<8x256xf32> -> vector<8x256xf32>
    %c40 = arith.constant 40 : index
    %c0_38 = arith.constant 0 : index
    %159 = vector.load %arg10[%c40, %c0_38] : memref<64x256xf32, #tpu.memory_space<vmem>>, vector<8x256xf32>
    %160 = arith.addf %158, %159 : vector<8x256xf32>
    %161 = arith.negf %160 : vector<8x256xf32>
    %162 = math.exp %161 : vector<8x256xf32>
    %cst_39 = arith.constant 1.000000e+00 : f32
    %163 = vector.broadcast %cst_39 : f32 to vector<8x256xf32>
    %164 = arith.addf %163, %162 : vector<8x256xf32>
    %165 = arith.divf %163, %164 : vector<8x256xf32>
    %166 = math.tanh %160 : vector<8x256xf32>
    %167 = vector.extract_strided_slice %165 {offsets = [0, 0], sizes = [8, 32], strides = [1, 1]} : vector<8x256xf32> to vector<8x32xf32>
    %168 = vector.extract_strided_slice %165 {offsets = [0, 32], sizes = [8, 32], strides = [1, 1]} : vector<8x256xf32> to vector<8x32xf32>
    %169 = vector.extract_strided_slice %166 {offsets = [0, 64], sizes = [8, 32], strides = [1, 1]} : vector<8x256xf32> to vector<8x32xf32>
    %170 = vector.extract_strided_slice %165 {offsets = [0, 96], sizes = [8, 32], strides = [1, 1]} : vector<8x256xf32> to vector<8x32xf32>
    %171 = arith.mulf %168, %142 : vector<8x32xf32>
    %172 = arith.mulf %167, %169 : vector<8x32xf32>
    %173 = arith.addf %171, %172 : vector<8x32xf32>
    %174 = math.tanh %173 : vector<8x32xf32>
    %175 = arith.mulf %170, %174 : vector<8x32xf32>
    %176 = vector.extract_strided_slice %165 {offsets = [0, 128], sizes = [8, 32], strides = [1, 1]} : vector<8x256xf32> to vector<8x32xf32>
    %177 = vector.extract_strided_slice %165 {offsets = [0, 160], sizes = [8, 32], strides = [1, 1]} : vector<8x256xf32> to vector<8x32xf32>
    %178 = vector.extract_strided_slice %166 {offsets = [0, 192], sizes = [8, 32], strides = [1, 1]} : vector<8x256xf32> to vector<8x32xf32>
    %179 = vector.extract_strided_slice %165 {offsets = [0, 224], sizes = [8, 32], strides = [1, 1]} : vector<8x256xf32> to vector<8x32xf32>
    %180 = arith.mulf %177, %151 : vector<8x32xf32>
    %181 = arith.mulf %176, %178 : vector<8x32xf32>
    %182 = arith.addf %180, %181 : vector<8x32xf32>
    %183 = math.tanh %182 : vector<8x32xf32>
    %184 = arith.mulf %179, %183 : vector<8x32xf32>
    %c4 = arith.constant 4 : index
    %c0_40 = arith.constant 0 : index
    %c0_41 = arith.constant 0 : index
    %185 = vector.load %arg9[%c4, %c0_40, %c0_41] : memref<8x8x32xf32, #tpu.memory_space<vmem>>, vector<1x8x32xf32>
    %186 = vector.shape_cast %185 : vector<1x8x32xf32> to vector<8x32xf32>
    %187 = vector.shape_cast %184 : vector<8x32xf32> to vector<1x8x32xf32>
    tpu.vector_store %arg9[%c4, %c0_40, %c0_41], %187 {strides = array<i32>} : memref<8x8x32xf32, #tpu.memory_space<vmem>>, vector<1x8x32xf32>,
    %188 = tpu.concatenate %175, %184 in 1 : vector<8x32xf32>, vector<8x32xf32> -> vector<8x64xf32>
    %cst_42 = arith.constant dense<0.000000e+00> : vector<8x256xf32>
    %189 = tpu.matmul %188, %11, %cst_42 {dimension_numbers = #tpu.dot_dimension_numbers<[1], [0], [0], [1], [0, 0, 1, 1], [], []>} : vector<8x64xf32>, vector<64x256xf32>, vector<8x256xf32> -> vector<8x256xf32>
    %c48 = arith.constant 48 : index
    %c0_43 = arith.constant 0 : index
    %190 = vector.load %arg10[%c48, %c0_43] : memref<64x256xf32, #tpu.memory_space<vmem>>, vector<8x256xf32>
    %191 = arith.addf %189, %190 : vector<8x256xf32>
    %192 = arith.negf %191 : vector<8x256xf32>
    %193 = math.exp %192 : vector<8x256xf32>
    %cst_44 = arith.constant 1.000000e+00 : f32
    %194 = vector.broadcast %cst_44 : f32 to vector<8x256xf32>
    %195 = arith.addf %194, %193 : vector<8x256xf32>
    %196 = arith.divf %194, %195 : vector<8x256xf32>
    %197 = math.tanh %191 : vector<8x256xf32>
    %198 = vector.extract_strided_slice %196 {offsets = [0, 0], sizes = [8, 32], strides = [1, 1]} : vector<8x256xf32> to vector<8x32xf32>
    %199 = vector.extract_strided_slice %196 {offsets = [0, 32], sizes = [8, 32], strides = [1, 1]} : vector<8x256xf32> to vector<8x32xf32>
    %200 = vector.extract_strided_slice %197 {offsets = [0, 64], sizes = [8, 32], strides = [1, 1]} : vector<8x256xf32> to vector<8x32xf32>
    %201 = vector.extract_strided_slice %196 {offsets = [0, 96], sizes = [8, 32], strides = [1, 1]} : vector<8x256xf32> to vector<8x32xf32>
    %202 = arith.mulf %199, %173 : vector<8x32xf32>
    %203 = arith.mulf %198, %200 : vector<8x32xf32>
    %204 = arith.addf %202, %203 : vector<8x32xf32>
    %205 = math.tanh %204 : vector<8x32xf32>
    %206 = arith.mulf %201, %205 : vector<8x32xf32>
    %207 = vector.extract_strided_slice %196 {offsets = [0, 128], sizes = [8, 32], strides = [1, 1]} : vector<8x256xf32> to vector<8x32xf32>
    %208 = vector.extract_strided_slice %196 {offsets = [0, 160], sizes = [8, 32], strides = [1, 1]} : vector<8x256xf32> to vector<8x32xf32>
    %209 = vector.extract_strided_slice %197 {offsets = [0, 192], sizes = [8, 32], strides = [1, 1]} : vector<8x256xf32> to vector<8x32xf32>
    %210 = vector.extract_strided_slice %196 {offsets = [0, 224], sizes = [8, 32], strides = [1, 1]} : vector<8x256xf32> to vector<8x32xf32>
    %211 = arith.mulf %208, %182 : vector<8x32xf32>
    %212 = arith.mulf %207, %209 : vector<8x32xf32>
    %213 = arith.addf %211, %212 : vector<8x32xf32>
    %214 = math.tanh %213 : vector<8x32xf32>
    %215 = arith.mulf %210, %214 : vector<8x32xf32>
    %c5 = arith.constant 5 : index
    %c0_45 = arith.constant 0 : index
    %c0_46 = arith.constant 0 : index
    %216 = vector.load %arg9[%c5, %c0_45, %c0_46] : memref<8x8x32xf32, #tpu.memory_space<vmem>>, vector<1x8x32xf32>
    %217 = vector.shape_cast %216 : vector<1x8x32xf32> to vector<8x32xf32>
    %218 = vector.shape_cast %215 : vector<8x32xf32> to vector<1x8x32xf32>
    tpu.vector_store %arg9[%c5, %c0_45, %c0_46], %218 {strides = array<i32>} : memref<8x8x32xf32, #tpu.memory_space<vmem>>, vector<1x8x32xf32>,
    %219 = tpu.concatenate %206, %215 in 1 : vector<8x32xf32>, vector<8x32xf32> -> vector<8x64xf32>
    %cst_47 = arith.constant dense<0.000000e+00> : vector<8x256xf32>
    %220 = tpu.matmul %219, %11, %cst_47 {dimension_numbers = #tpu.dot_dimension_numbers<[1], [0], [0], [1], [0, 0, 1, 1], [], []>} : vector<8x64xf32>, vector<64x256xf32>, vector<8x256xf32> -> vector<8x256xf32>
    %c56 = arith.constant 56 : index
    %c0_48 = arith.constant 0 : index
    %221 = vector.load %arg10[%c56, %c0_48] : memref<64x256xf32, #tpu.memory_space<vmem>>, vector<8x256xf32>
    %222 = arith.addf %220, %221 : vector<8x256xf32>
    %223 = arith.negf %222 : vector<8x256xf32>
    %224 = math.exp %223 : vector<8x256xf32>
    %cst_49 = arith.constant 1.000000e+00 : f32
    %225 = vector.broadcast %cst_49 : f32 to vector<8x256xf32>
    %226 = arith.addf %225, %224 : vector<8x256xf32>
    %227 = arith.divf %225, %226 : vector<8x256xf32>
    %228 = math.tanh %222 : vector<8x256xf32>
    %229 = vector.extract_strided_slice %227 {offsets = [0, 0], sizes = [8, 32], strides = [1, 1]} : vector<8x256xf32> to vector<8x32xf32>
    %230 = vector.extract_strided_slice %227 {offsets = [0, 32], sizes = [8, 32], strides = [1, 1]} : vector<8x256xf32> to vector<8x32xf32>
    %231 = vector.extract_strided_slice %228 {offsets = [0, 64], sizes = [8, 32], strides = [1, 1]} : vector<8x256xf32> to vector<8x32xf32>
    %232 = vector.extract_strided_slice %227 {offsets = [0, 96], sizes = [8, 32], strides = [1, 1]} : vector<8x256xf32> to vector<8x32xf32>
    %233 = arith.mulf %230, %204 : vector<8x32xf32>
    %234 = arith.mulf %229, %231 : vector<8x32xf32>
    %235 = arith.addf %233, %234 : vector<8x32xf32>
    %236 = math.tanh %235 : vector<8x32xf32>
    %237 = arith.mulf %232, %236 : vector<8x32xf32>
    %238 = vector.extract_strided_slice %227 {offsets = [0, 128], sizes = [8, 32], strides = [1, 1]} : vector<8x256xf32> to vector<8x32xf32>
    %239 = vector.extract_strided_slice %227 {offsets = [0, 160], sizes = [8, 32], strides = [1, 1]} : vector<8x256xf32> to vector<8x32xf32>
    %240 = vector.extract_strided_slice %228 {offsets = [0, 192], sizes = [8, 32], strides = [1, 1]} : vector<8x256xf32> to vector<8x32xf32>
    %241 = vector.extract_strided_slice %227 {offsets = [0, 224], sizes = [8, 32], strides = [1, 1]} : vector<8x256xf32> to vector<8x32xf32>
    %242 = arith.mulf %239, %213 : vector<8x32xf32>
    %243 = arith.mulf %238, %240 : vector<8x32xf32>
    %244 = arith.addf %242, %243 : vector<8x32xf32>
    %245 = math.tanh %244 : vector<8x32xf32>
    %246 = arith.mulf %241, %245 : vector<8x32xf32>
    %c6 = arith.constant 6 : index
    %c0_50 = arith.constant 0 : index
    %c0_51 = arith.constant 0 : index
    %247 = vector.load %arg9[%c6, %c0_50, %c0_51] : memref<8x8x32xf32, #tpu.memory_space<vmem>>, vector<1x8x32xf32>
    %248 = vector.shape_cast %247 : vector<1x8x32xf32> to vector<8x32xf32>
    %249 = vector.shape_cast %246 : vector<8x32xf32> to vector<1x8x32xf32>
    tpu.vector_store %arg9[%c6, %c0_50, %c0_51], %249 {strides = array<i32>} : memref<8x8x32xf32, #tpu.memory_space<vmem>>, vector<1x8x32xf32>,
    %250 = tpu.concatenate %237, %246 in 1 : vector<8x32xf32>, vector<8x32xf32> -> vector<8x64xf32>
    %cst_52 = arith.constant dense<0.000000e+00> : vector<8x256xf32>
    %251 = tpu.matmul %250, %11, %cst_52 {dimension_numbers = #tpu.dot_dimension_numbers<[1], [0], [0], [1], [0, 0, 1, 1], [], []>} : vector<8x64xf32>, vector<64x256xf32>, vector<8x256xf32> -> vector<8x256xf32>
    %252 = vector.broadcast %12 : vector<1x256xf32> to vector<8x256xf32>
    %253 = arith.addf %251, %252 : vector<8x256xf32>
    %254 = arith.negf %253 : vector<8x256xf32>
    %255 = math.exp %254 : vector<8x256xf32>
    %cst_53 = arith.constant 1.000000e+00 : f32
    %256 = vector.broadcast %cst_53 : f32 to vector<8x256xf32>
    %257 = arith.addf %256, %255 : vector<8x256xf32>
    %258 = arith.divf %256, %257 : vector<8x256xf32>
    %259 = math.tanh %253 : vector<8x256xf32>
    %260 = vector.extract_strided_slice %258 {offsets = [0, 128], sizes = [8, 32], strides = [1, 1]} : vector<8x256xf32> to vector<8x32xf32>
    %261 = vector.extract_strided_slice %258 {offsets = [0, 160], sizes = [8, 32], strides = [1, 1]} : vector<8x256xf32> to vector<8x32xf32>
    %262 = vector.extract_strided_slice %259 {offsets = [0, 192], sizes = [8, 32], strides = [1, 1]} : vector<8x256xf32> to vector<8x32xf32>
    %263 = vector.extract_strided_slice %258 {offsets = [0, 224], sizes = [8, 32], strides = [1, 1]} : vector<8x256xf32> to vector<8x32xf32>
    %264 = arith.mulf %261, %244 : vector<8x32xf32>
    %265 = arith.mulf %260, %262 : vector<8x32xf32>
    %266 = arith.addf %264, %265 : vector<8x32xf32>
    %267 = math.tanh %266 : vector<8x32xf32>
    %268 = arith.mulf %263, %267 : vector<8x32xf32>
    %c7 = arith.constant 7 : index
    %c0_54 = arith.constant 0 : index
    %c0_55 = arith.constant 0 : index
    %269 = vector.load %arg9[%c7, %c0_54, %c0_55] : memref<8x8x32xf32, #tpu.memory_space<vmem>>, vector<1x8x32xf32>
    %270 = vector.shape_cast %269 : vector<1x8x32xf32> to vector<8x32xf32>
    %271 = vector.shape_cast %268 : vector<8x32xf32> to vector<1x8x32xf32>
    tpu.vector_store %arg9[%c7, %c0_54, %c0_55], %271 {strides = array<i32>} : memref<8x8x32xf32, #tpu.memory_space<vmem>>, vector<1x8x32xf32>,
    %c0_56 = arith.constant 0 : index
    %c0_57 = arith.constant 0 : index
    %c0_58 = arith.constant 0 : index
    %272 = vector.load %arg9[%c0_56, %c0_57, %c0_58] : memref<8x8x32xf32, #tpu.memory_space<vmem>>, vector<8x8x32xf32>
    %c0_59 = arith.constant 0 : index
    %c0_60 = arith.constant 0 : index
    %c0_61 = arith.constant 0 : index
    %273 = vector.load %arg4[%c0_59, %c0_60, %c0_61] : memref<1x1x32xf32, #tpu.memory_space<vmem>>, vector<1x1x32xf32>
    %274 = vector.broadcast %273 : vector<1x1x32xf32> to vector<8x8x32xf32>
    %275 = arith.mulf %272, %274 : vector<8x8x32xf32>
    %cst_62 = arith.constant dense<0.000000e+00> : vector<8x8xf32>
    %276 = vector.multi_reduction <add>, %275, %cst_62 [2] : vector<8x8x32xf32> to vector<8x8xf32>
    %c0_63 = arith.constant 0 : index
    %c0_64 = arith.constant 0 : index
    %277 = vector.load %arg5[%c0_63, %c0_64] : memref<1x1xf32, #tpu.memory_space<vmem>>, vector<1x1xf32>
    %278 = vector.broadcast %277 : vector<1x1xf32> to vector<8x8xf32>
    %279 = arith.addf %276, %278 : vector<8x8xf32>
    %280 = arith.negf %279 : vector<8x8xf32>
    %281 = math.exp %280 : vector<8x8xf32>
    %cst_65 = arith.constant 1.000000e+00 : f32
    %282 = vector.broadcast %cst_65 : f32 to vector<8x8xf32>
    %283 = arith.addf %282, %281 : vector<8x8xf32>
    %284 = arith.divf %282, %283 : vector<8x8xf32>
    %c0_66 = arith.constant 0 : index
    %c0_67 = arith.constant 0 : index
    %285 = vector.load %arg6[%c0_66, %c0_67] : memref<8x8xf32, #tpu.memory_space<vmem>>, vector<8x8xf32>
    tpu.vector_store %arg6[%c0_66, %c0_67], %284 {strides = array<i32>} : memref<8x8xf32, #tpu.memory_space<vmem>>, vector<8x8xf32>,
    %cst_68 = arith.constant 0.000000e+00 : f32
    %286 = vector.broadcast %cst_68 : f32 to vector<8x96xf32>
    %287 = tpu.concatenate %237, %286 in 1 : vector<8x32xf32>, vector<8x96xf32> -> vector<8x128xf32>
    %c0_69 = arith.constant 0 : index
    %c0_70 = arith.constant 0 : index
    %c0_71 = arith.constant 0 : index
    %288 = vector.load %arg7[%c0_69, %c0_70, %c0_71] : memref<2x8x128xf32, #tpu.memory_space<vmem>>, vector<1x8x128xf32>
    %289 = vector.shape_cast %288 : vector<1x8x128xf32> to vector<8x128xf32>
    %290 = vector.shape_cast %287 : vector<8x128xf32> to vector<1x8x128xf32>
    tpu.vector_store %arg7[%c0_69, %c0_70, %c0_71], %290 {strides = array<i32>} : memref<2x8x128xf32, #tpu.memory_space<vmem>>, vector<1x8x128xf32>,
    %291 = tpu.concatenate %235, %286 in 1 : vector<8x32xf32>, vector<8x96xf32> -> vector<8x128xf32>
    %c0_72 = arith.constant 0 : index
    %c0_73 = arith.constant 0 : index
    %c0_74 = arith.constant 0 : index
    %292 = vector.load %arg8[%c0_72, %c0_73, %c0_74] : memref<2x8x128xf32, #tpu.memory_space<vmem>>, vector<1x8x128xf32>
    %293 = vector.shape_cast %292 : vector<1x8x128xf32> to vector<8x128xf32>
    %294 = vector.shape_cast %291 : vector<8x128xf32> to vector<1x8x128xf32>
    tpu.vector_store %arg8[%c0_72, %c0_73, %c0_74], %294 {strides = array<i32>} : memref<2x8x128xf32, #tpu.memory_space<vmem>>, vector<1x8x128xf32>,
    %cst_75 = arith.constant 0.000000e+00 : f32
    %295 = vector.broadcast %cst_75 : f32 to vector<8x96xf32>
    %296 = tpu.concatenate %268, %295 in 1 : vector<8x32xf32>, vector<8x96xf32> -> vector<8x128xf32>
    %c1_76 = arith.constant 1 : index
    %c0_77 = arith.constant 0 : index
    %c0_78 = arith.constant 0 : index
    %297 = vector.load %arg7[%c1_76, %c0_77, %c0_78] : memref<2x8x128xf32, #tpu.memory_space<vmem>>, vector<1x8x128xf32>
    %298 = vector.shape_cast %297 : vector<1x8x128xf32> to vector<8x128xf32>
    %299 = vector.shape_cast %296 : vector<8x128xf32> to vector<1x8x128xf32>
    tpu.vector_store %arg7[%c1_76, %c0_77, %c0_78], %299 {strides = array<i32>} : memref<2x8x128xf32, #tpu.memory_space<vmem>>, vector<1x8x128xf32>,
    %300 = tpu.concatenate %266, %295 in 1 : vector<8x32xf32>, vector<8x96xf32> -> vector<8x128xf32>
    %c1_79 = arith.constant 1 : index
    %c0_80 = arith.constant 0 : index
    %c0_81 = arith.constant 0 : index
    %301 = vector.load %arg8[%c1_79, %c0_80, %c0_81] : memref<2x8x128xf32, #tpu.memory_space<vmem>>, vector<1x8x128xf32>
    %302 = vector.shape_cast %301 : vector<1x8x128xf32> to vector<8x128xf32>
    %303 = vector.shape_cast %300 : vector<8x128xf32> to vector<1x8x128xf32>
    tpu.vector_store %arg8[%c1_79, %c0_80, %c0_81], %303 {strides = array<i32>} : memref<2x8x128xf32, #tpu.memory_space<vmem>>, vector<1x8x128xf32>,
    return
  }
}

</mosaic_0001>

<llo_original>
// kernel: tpu_custom_call.1
$region0: #{tpu_custom_call.1}
  #allocation0 [shape = 'u32[]', space=smem, size = 0x4, offset = 0x4, fixed_abs, tag = 'smem constant byte address 0x4 - core index']
  #allocation1 [shape = 'u32[144,128]{1,0:T(1,128)}', space=vmem, size = 0x12000, scoped, tag = 'internal scratch']
  #allocation2 [shape = 'f32[8,8,32]{2,1,0:T(8,128)}', space=vmem, size = 0x8000, scoped, tag = 'scratch operand']
  #allocation3 [shape = 'f32[64,256]{1,0:T(8,128)}', space=vmem, size = 0x10000, scoped, tag = 'scratch operand']
  #allocation4 [shape = 'f32[1,1]{1,0:T(1,128)S(1)}', space=vmem, size = 0x200, scoped, tag = 'scoped memory for tpu_custom_call.1']
  %s0 = inlined_call_operand.vmem [shape: f32[64,1], index: 0, kind: input, shape index: {}]
  %s1 = inlined_call_operand.vmem [shape: f32[1,128], index: 1, kind: input, shape index: {}]
  %s2 = inlined_call_operand.hbm [shape: f32[64,256], index: 2, kind: input, shape index: {}]
  %s3 = inlined_call_operand.vmem [shape: f32[1,256], index: 3, kind: input, shape index: {}]
  %s4 = inlined_call_operand.vmem [shape: f32[1,1,32], index: 4, kind: input, shape index: {}]
  %s5 = inlined_call_operand.<no memory space> [shape: f32[1,1], index: 5, kind: input, shape index: {}]
  %s6 = inlined_call_operand.hbm [shape: f32[8,8], index: 6, kind: output, shape index: {0}]
  %s7 = inlined_call_operand.hbm [shape: f32[2,8,128], index: 7, kind: output, shape index: {1}]
  %s8 = inlined_call_operand.hbm [shape: f32[2,8,128], index: 8, kind: output, shape index: {2}]
  %9 = xla_tuple %s6, %s7, %s8
  %s10 = sld [smem:[#allocation0]]
  $region54: #{tpu_custom_call.1} parent=0
    _
  %s12 = ssub.s32 1, %s10
  %s13 = scalar_select 0, %s12, %s10
  %v14 = vstv %s5
  %15 = vst [vmem:[#allocation4] sm:$0x1] %v14
  $region1: #{tpu_custom_call.1} parent=0
    #allocation5 [shape = 'u8[65536]{0}', space=vmem, size = 0x10000, scoped, tag = 'input window, operand 2, single buffered']
    #allocation6 [shape = 's32[1]{0}', space=sflag, size = 0x4, scoped, tag = 'scoped memory for tpu_custom_call.1']
    #allocation7 [shape = 's32[1]{0}', space=sflag, size = 0x4, scoped, tag = 'scoped memory for tpu_custom_call.1']
    #allocation8 [shape = 'u8[4096]{0}', space=vmem, size = 0x1000, scoped, tag = 'output window, operand 0, single buffered']
    #allocation9 [shape = 'u8[8192]{0}', space=vmem, size = 0x2000, scoped, tag = 'output window, operand 1, single buffered']
    #allocation10 [shape = 's32[1]{0}', space=sflag, size = 0x4, scoped, tag = 'scoped memory for tpu_custom_call.1']
    #allocation11 [shape = 'u8[8192]{0}', space=vmem, size = 0x2000, scoped, tag = 'output window, operand 2, single buffered']
    %16 = vsyncpa [#allocation6], 0
    %17 = vsyncpa [#allocation7], 0
    %18 = vsyncpa [#allocation10], 0
    // Predicated region
    $region2: #{tpu_custom_call.1} parent=1 // pred_check
      _
    $region3: #{tpu_custom_call.1} parent=1 // pred_check_branch
      %20 = sbr.rel (0) target = $region5
    $region4: #{tpu_custom_call.1} parent=1 // pred_region
      _
    $region5: #{tpu_custom_call.1} parent=1 // pred_fallthru
      _
    // Predicated region
    $region6: #{tpu_custom_call.1} parent=1 // pred_check
      _
    $region7: #{tpu_custom_call.1} parent=1 // pred_check_branch
      %22 = sbr.rel (0) target = $region9
    $region8: #{tpu_custom_call.1} parent=1 // pred_region
      _
    $region9: #{tpu_custom_call.1} parent=1 // pred_fallthru
      _
    // Predicated region
    $region10: #{tpu_custom_call.1} parent=1 // pred_check
      _
    $region11: #{tpu_custom_call.1} parent=1 // pred_check_branch
      %24 = sbr.rel (0) target = $region13
    $region12: #{tpu_custom_call.1} parent=1 // pred_region
      %s26 = ssub.s32 2048, 2048
      %27 = vsyncadd [#allocation6], %s26
      %s28 = sshll.u32 [#allocation5], 4
      %s29 = int_to_ptr.vmem [resolvable:$true] %s28
      %34 = dma.hbm_to_vmem [thread:$0]  %s2, 2048, %s29, [#allocation6], 256, 256, 16
    $region13: #{tpu_custom_call.1} parent=1 // pred_fallthru
      _
    // Predicated region
    $region14: #{tpu_custom_call.1} parent=1 // pred_check
      _
    $region15: #{tpu_custom_call.1} parent=1 // pred_check_branch
      %36 = sbr.rel (0) target = $region17
    $region16: #{tpu_custom_call.1} parent=1 // pred_region
      _
    $region17: #{tpu_custom_call.1} parent=1 // pred_fallthru
      _
    // Predicated region
    $region18: #{tpu_custom_call.1} parent=1 // pred_check
      _
    $region19: #{tpu_custom_call.1} parent=1 // pred_check_branch
      %38 = sbr.rel (0) target = $region21
    $region20: #{tpu_custom_call.1} parent=1 // pred_region
      _
    $region21: #{tpu_custom_call.1} parent=1 // pred_fallthru
      _
    // Predicated region
    $region22: #{tpu_custom_call.1} parent=1 // pred_check
      _
    $region23: #{tpu_custom_call.1} parent=1 // pred_check_branch
      %40 = sbr.rel (0) target = $region25
    $region24: #{tpu_custom_call.1} parent=1 // pred_region
      _
    $region25: #{tpu_custom_call.1} parent=1 // pred_fallthru
      _
    // Predicated region
    $region26: #{tpu_custom_call.1} parent=1 // pred_check
      _
    $region27: #{tpu_custom_call.1} parent=1 // pred_check_branch
      %42 = sbr.rel (0) target = $region29
    $region28: #{tpu_custom_call.1} parent=1 // pred_region
      %43 = dma.done [#allocation6], 2048
    $region29: #{tpu_custom_call.1} parent=1 // pred_fallthru
      _
    %v44 = vld [vmem:[%s0] sm:$0xff]
    %v45 = vld [vmem:[%s0 + $0x8] sm:$0xff]
    %v46 = vld [vmem:[%s0 + $0x10] sm:$0xff]
    %v47 = vld [vmem:[%s0 + $0x18] sm:$0xff]
    %v48 = vld [vmem:[%s0 + $0x20] sm:$0xff]
    %v49 = vld [vmem:[%s0 + $0x28] sm:$0xff]
    %v50 = vld [vmem:[%s0 + $0x30] sm:$0xff]
    %v51 = vld [vmem:[%s0 + $0x38] sm:$0xff]
    %v52 = vld [vmem:[%s1] sm:$0x1]
    %54 = vset.pattern.permute.xlu0 0
    %55 = vperm.xlu0 %54, %v44
    %v56 = vpop.permute.xlu0 %55
    %59 = vset.pattern.permute.xlu0 0
    %60 = vperm.xlu0 %59, %v45
    %v61 = vpop.permute.xlu0 %60
    %64 = vset.pattern.permute.xlu0 0
    %65 = vperm.xlu0 %64, %v46
    %v66 = vpop.permute.xlu0 %65
    %69 = vset.pattern.permute.xlu0 0
    %70 = vperm.xlu0 %69, %v47
    %v71 = vpop.permute.xlu0 %70
    %74 = vset.pattern.permute.xlu0 0
    %75 = vperm.xlu0 %74, %v48
    %v76 = vpop.permute.xlu0 %75
    %79 = vset.pattern.permute.xlu0 0
    %80 = vperm.xlu0 %79, %v49
    %v81 = vpop.permute.xlu0 %80
    %84 = vset.pattern.permute.xlu0 0
    %85 = vperm.xlu0 %84, %v50
    %v86 = vpop.permute.xlu0 %85
    %89 = vset.pattern.permute.xlu0 0
    %90 = vperm.xlu0 %89, %v51
    %v91 = vpop.permute.xlu0 %90
    %v94 = vlaneseq
    %v95 = vshrl.u32 %v94, 7
    %v96 = vsub.s32 0, %v95
    %v97 = vrot.slane %v52, %v96
    %v99 = vmul.f32 %v56, %v97
    %v100 = vmul.f32 %v61, %v97
    %v101 = vmul.f32 %v66, %v97
    %v102 = vmul.f32 %v71, %v97
    %v103 = vmul.f32 %v76, %v97
    %v104 = vmul.f32 %v81, %v97
    %v105 = vmul.f32 %v86, %v97
    %v106 = vmul.f32 %v91, %v97
    %v107 = vld [vmem:[%s3] sm:$0x3]
    %v109 = vlaneseq
    %v110 = vshrl.u32 %v109, 7
    %v111 = vsub.s32 0, %v110
    %v112 = vrot.slane %v107, %v111
    %v113 = vlaneseq
    %v114 = vshrl.u32 %v113, 7
    %v115 = vsub.s32 1, %v114
    %v116 = vrot.slane %v107, %v115
    %v119 = vadd.f32 %v99, %v112
    %v120 = vadd.f32 %v116, 0.0
    %v121 = vadd.f32 %v100, %v112
    %v122 = vadd.f32 %v101, %v112
    %v123 = vadd.f32 %v102, %v112
    %v124 = vadd.f32 %v103, %v112
    %v125 = vadd.f32 %v104, %v112
    %v126 = vadd.f32 %v105, %v112
    %v127 = vadd.f32 %v106, %v112
    %128 = vst [vmem:[#allocation3] sm:$0xff] %v119
    %129 = vst [vmem:[#allocation3 + $0x8] sm:$0xff] %v120
    %130 = vst [vmem:[#allocation3 + $0x10] sm:$0xff] %v121
    %131 = vst [vmem:[#allocation3 + $0x18] sm:$0xff] %v120
    %132 = vst [vmem:[#allocation3 + $0x20] sm:$0xff] %v122
    %133 = vst [vmem:[#allocation3 + $0x28] sm:$0xff] %v120
    %134 = vst [vmem:[#allocation3 + $0x30] sm:$0xff] %v123
    %135 = vst [vmem:[#allocation3 + $0x38] sm:$0xff] %v120
    %136 = vst [vmem:[#allocation3 + $0x40] sm:$0xff] %v124
    %137 = vst [vmem:[#allocation3 + $0x48] sm:$0xff] %v120
    %138 = vst [vmem:[#allocation3 + $0x50] sm:$0xff] %v125
    %139 = vst [vmem:[#allocation3 + $0x58] sm:$0xff] %v120
    %140 = vst [vmem:[#allocation3 + $0x60] sm:$0xff] %v126
    %141 = vst [vmem:[#allocation3 + $0x68] sm:$0xff] %v120
    %142 = vst [vmem:[#allocation3 + $0x70] sm:$0xff] %v127
    %143 = vst [vmem:[#allocation3 + $0x78] sm:$0xff] %v120
    %v144 = vld [vmem:[#allocation5] sm:$0xff]
    %v145 = vld [vmem:[#allocation5 + $0x8] sm:$0xff]
    %v146 = vld [vmem:[#allocation5 + $0x10] sm:$0xff]
    %v147 = vld [vmem:[#allocation5 + $0x18] sm:$0xff]
    %v148 = vld [vmem:[#allocation5 + $0x20] sm:$0xff]
    %v149 = vld [vmem:[#allocation5 + $0x28] sm:$0xff]
    %v150 = vld [vmem:[#allocation5 + $0x30] sm:$0xff]
    %v151 = vld [vmem:[#allocation5 + $0x38] sm:$0xff]
    %v152 = vld [vmem:[#allocation5 + $0x40] sm:$0xff]
    %v153 = vld [vmem:[#allocation5 + $0x48] sm:$0xff]
    %v154 = vld [vmem:[#allocation5 + $0x50] sm:$0xff]
    %v155 = vld [vmem:[#allocation5 + $0x58] sm:$0xff]
    %v156 = vld [vmem:[#allocation5 + $0x60] sm:$0xff]
    %v157 = vld [vmem:[#allocation5 + $0x68] sm:$0xff]
    %v158 = vld [vmem:[#allocation5 + $0x70] sm:$0xff]
    %v159 = vld [vmem:[#allocation5 + $0x78] sm:$0xff]
    %v160 = vld [vmem:[%s3] sm:$0x3]
    %v161 = vld [vmem:[#allocation3] sm:$0xff]
    %vm162 = vcmask 523264
    %v164 = vsel %vm162, 0.0, 0
    %166 = vmatprep.subr.mxu0 %v145
    %167 = vmatpush1.msra.mxu0 %v144
    %168 = vmatprep.subr.mxu0 %v147
    %169 = vmatpush1.msra.mxu0 %v146
    %170 = vmatprep.subr.mxu0 %v149
    %171 = vmatpush1.msra.mxu0 %v148
    %172 = vmatprep.subr.mxu0 %v151
    %173 = vmatpush1.msra.mxu0 %v150
    %174 = vmatprep.subr.mxu0 %v153
    %175 = vmatpush1.msra.mxu0 %v152
    %176 = vmatprep.subr.mxu0 %v155
    %177 = vmatpush1.msra.mxu0 %v154
    %178 = vmatprep.subr.mxu0 %v157
    %179 = vmatpush1.msra.mxu0 %v156
    %180 = vmatprep.subr.mxu0 %v159
    %181 = vmatpush1.msra.mxu0 %v158
    %182 = vmatprep.subr.mxu0 0.0
    %183 = vmatpush1.msra.mxu0 0.0
    %184 = vmatprep.subr.mxu0 0.0
    %185 = vmatpush1.msra.mxu0 0.0
    %186 = vmatprep.subr.mxu0 0.0
    %187 = vmatpush1.msra.mxu0 0.0
    %188 = vmatprep.subr.mxu0 0.0
    %189 = vmatpush1.msra.mxu0 0.0
    %190 = vmatprep.subr.mxu0 0.0
    %191 = vmatpush1.msra.mxu0 0.0
    %192 = vmatprep.subr.mxu0 0.0
    %193 = vmatpush1.msra.mxu0 0.0
    %194 = vmatprep.subr.mxu0 0.0
    %195 = vmatpush1.msra.mxu0 0.0
    %196 = vmatprep.subr.mxu0 0.0
    %197 = vmatpush1.msra.mxu0 0.0
    %198 = vmatprep.subr.mxu0 0.0
    %199 = vmatpush1.msra.mxu0 0.0
    %200 = vmatprep.subr.mxu0 0.0
    %201 = vmatpush1.msra.mxu0 0.0
    %202 = vmatprep.subr.mxu0 0.0
    %203 = vmatpush1.msra.mxu0 0.0
    %204 = vmatprep.subr.mxu0 0.0
    %205 = vmatpush1.msra.mxu0 0.0
    %206 = vmatprep.subr.mxu0 0.0
    %207 = vmatpush1.msra.mxu0 0.0
    %208 = vmatprep.subr.mxu0 0.0
    %209 = vmatpush1.msra.mxu0 0.0
    %210 = vmatprep.subr.mxu0 0.0
    %211 = vmatpush1.msra.mxu0 0.0
    %212 = vmatprep.subr.mxu0 0.0
    %213 = vmatpush1.msra.mxu0 0.0
    %214 = vmatprep.subr.mxu0 0.0
    %215 = vmatpush1.msra.mxu0 0.0
    %216 = vmatprep.subr.mxu0 0.0
    %217 = vmatpush1.msra.mxu0 0.0
    %218 = vmatprep.subr.mxu0 0.0
    %219 = vmatpush1.msra.mxu0 0.0
    %220 = vmatprep.subr.mxu0 0.0
    %221 = vmatpush1.msra.mxu0 0.0
    %222 = vmatprep.subr.mxu0 0.0
    %223 = vmatpush1.msra.mxu0 0.0
    %224 = vmatprep.subr.mxu0 0.0
    %225 = vmatpush1.msra.mxu0 0.0
    %226 = vmatprep.subr.mxu0 0.0
    %227 = vmatpush1.msra.mxu0 0.0
    %228 = vmatprep.subr.mxu0 0.0
    %229 = vmatpush1.msra.mxu0 0.0
    %230 = vmatprep.mubr.f32.mxu0 0.0
    %231 = vmatmul.mubr.f32.gmra.mrb[0].mxu0 %v164
    %v232 = vpop.f32.mrb[0].mxu0
    %v233 = vadd.f32 %v161, %v232
    %v234 = vpop.f32.mrb[0].mxu0
    %235 = vdwg.mxu0
    %v236 = vxor.u32 %v233, 2147483648
    %v237 = vmul.f32 %v236, 1.442695
    %v238 = vpow.pop %v237
    %v239 = vadd.f32 %v238, 1.0
    %v240 = vrcp.pop %v239
    %v241 = vmul.f32 1.0, %v240
    %v242 = vtanh.pop %v233
    %v243 = vmul.f32 %v241, 0.0
    %245 = vrot.lane.b32.xlu0 %v242, 64
    %v246 = vpop.permute.xlu0 %245
    %v248 = vmul.f32 %v241, %v246
    %250 = vrot.lane.b32.xlu0 %v248, 32
    %v251 = vpop.permute.xlu0 %250
    %v253 = vadd.f32 %v243, %v251
    %v254 = vtanh.pop %v253
    %256 = vrot.lane.b32.xlu0 %v254, 64
    %v257 = vpop.permute.xlu0 %256
    %v259 = vmul.f32 %v241, %v257
    %261 = vrot.lane.b32.xlu0 %v259, 32
    %v262 = vpop.permute.xlu0 %261
    %vm264 = vcmask 261120
    %v265 = vsel %vm264, %v262, 0.0
    %v266 = vld [vmem:[#allocation3 + $0x10] sm:$0xff]
    %v267 = vld [vmem:[#allocation3 + $0x18] sm:$0xff]
    %v269 = vsel %vm162, %v265, 0
    %271 = vmatprep.subr.mxu0 %v145
    %272 = vmatpush1.msra.mxu0 %v144
    %273 = vmatprep.subr.mxu0 %v147
    %274 = vmatpush1.msra.mxu0 %v146
    %275 = vmatprep.subr.mxu0 %v149
    %276 = vmatpush1.msra.mxu0 %v148
    %277 = vmatprep.subr.mxu0 %v151
    %278 = vmatpush1.msra.mxu0 %v150
    %279 = vmatprep.subr.mxu0 %v153
    %280 = vmatpush1.msra.mxu0 %v152
    %281 = vmatprep.subr.mxu0 %v155
    %282 = vmatpush1.msra.mxu0 %v154
    %283 = vmatprep.subr.mxu0 %v157
    %284 = vmatpush1.msra.mxu0 %v156
    %285 = vmatprep.subr.mxu0 %v159
    %286 = vmatpush1.msra.mxu0 %v158
    %287 = vmatprep.subr.mxu0 0.0
    %288 = vmatpush1.msra.mxu0 0.0
    %289 = vmatprep.subr.mxu0 0.0
    %290 = vmatpush1.msra.mxu0 0.0
    %291 = vmatprep.subr.mxu0 0.0
    %292 = vmatpush1.msra.mxu0 0.0
    %293 = vmatprep.subr.mxu0 0.0
    %294 = vmatpush1.msra.mxu0 0.0
    %295 = vmatprep.subr.mxu0 0.0
    %296 = vmatpush1.msra.mxu0 0.0
    %297 = vmatprep.subr.mxu0 0.0
    %298 = vmatpush1.msra.mxu0 0.0
    %299 = vmatprep.subr.mxu0 0.0
    %300 = vmatpush1.msra.mxu0 0.0
    %301 = vmatprep.subr.mxu0 0.0
    %302 = vmatpush1.msra.mxu0 0.0
    %303 = vmatprep.subr.mxu0 0.0
    %304 = vmatpush1.msra.mxu0 0.0
    %305 = vmatprep.subr.mxu0 0.0
    %306 = vmatpush1.msra.mxu0 0.0
    %307 = vmatprep.subr.mxu0 0.0
    %308 = vmatpush1.msra.mxu0 0.0
    %309 = vmatprep.subr.mxu0 0.0
    %310 = vmatpush1.msra.mxu0 0.0
    %311 = vmatprep.subr.mxu0 0.0
    %312 = vmatpush1.msra.mxu0 0.0
    %313 = vmatprep.subr.mxu0 0.0
    %314 = vmatpush1.msra.mxu0 0.0
    %315 = vmatprep.subr.mxu0 0.0
    %316 = vmatpush1.msra.mxu0 0.0
    %317 = vmatprep.subr.mxu0 0.0
    %318 = vmatpush1.msra.mxu0 0.0
    %319 = vmatprep.subr.mxu0 0.0
    %320 = vmatpush1.msra.mxu0 0.0
    %321 = vmatprep.subr.mxu0 0.0
    %322 = vmatpush1.msra.mxu0 0.0
    %323 = vmatprep.subr.mxu0 0.0
    %324 = vmatpush1.msra.mxu0 0.0
    %325 = vmatprep.subr.mxu0 0.0
    %326 = vmatpush1.msra.mxu0 0.0
    %327 = vmatprep.subr.mxu0 0.0
    %328 = vmatpush1.msra.mxu0 0.0
    %329 = vmatprep.subr.mxu0 0.0
    %330 = vmatpush1.msra.mxu0 0.0
    %331 = vmatprep.subr.mxu0 0.0
    %332 = vmatpush1.msra.mxu0 0.0
    %333 = vmatprep.subr.mxu0 0.0
    %334 = vmatpush1.msra.mxu0 0.0
    %335 = vmatprep.mubr.f32.mxu0 0.0
    %336 = vmatmul.mubr.f32.gmra.mrb[0].mxu0 %v269
    %v337 = vpop.f32.mrb[0].mxu0
    %v338 = vadd.f32 %v266, %v337
    %v339 = vpop.f32.mrb[0].mxu0
    %v340 = vadd.f32 %v267, %v339
    %341 = vdwg.mxu0
    %v342 = vxor.u32 %v338, 2147483648
    %v343 = vxor.u32 %v340, 2147483648
    %v344 = vmul.f32 %v342, 1.442695
    %v345 = vpow.pop %v344
    %v346 = vmul.f32 %v343, 1.442695
    %v347 = vpow.pop %v346
    %v348 = vadd.f32 %v345, 1.0
    %v349 = vadd.f32 %v347, 1.0
    %v350 = vrcp.pop %v348
    %v351 = vmul.f32 1.0, %v350
    %v352 = vrcp.pop %v349
    %v353 = vmul.f32 1.0, %v352
    %v354 = vtanh.pop %v338
    %v355 = vtanh.pop %v340
    %v356 = vmul.f32 %v351, %v253
    %358 = vrot.lane.b32.xlu0 %v354, 64
    %v359 = vpop.permute.xlu0 %358
    %v361 = vmul.f32 %v351, %v359
    %363 = vrot.lane.b32.xlu0 %v361, 32
    %v364 = vpop.permute.xlu0 %363
    %v366 = vadd.f32 %v356, %v364
    %v367 = vtanh.pop %v366
    %369 = vrot.lane.b32.xlu0 %v367, 64
    %v370 = vpop.permute.xlu0 %369
    %v372 = vmul.f32 %v351, %v370
    %v373 = vmul.f32 %v353, 0.0
    %375 = vrot.lane.b32.xlu0 %v355, 64
    %v376 = vpop.permute.xlu0 %375
    %v378 = vmul.f32 %v353, %v376
    %380 = vrot.lane.b32.xlu0 %v378, 32
    %v381 = vpop.permute.xlu0 %380
    %v383 = vadd.f32 %v373, %v381
    %v384 = vtanh.pop %v383
    %386 = vrot.lane.b32.xlu0 %v384, 64
    %v387 = vpop.permute.xlu0 %386
    %v389 = vmul.f32 %v353, %v387
    %391 = vrot.lane.b32.xlu0 %v389, 32
    %v392 = vpop.permute.xlu0 %391
    %394 = vst.msk [vmem:[#allocation2] sm:$0xff] %vm264, %v392
    %396 = vrot.lane.b32.xlu0 %v372, 32
    %v397 = vpop.permute.xlu0 %396
    %399 = vrot.lane.b32.xlu0 %v389, 64
    %v400 = vpop.permute.xlu0 %399
    %v402 = vsel %vm264, %v397, %v400
    %v403 = vld [vmem:[#allocation3 + $0x20] sm:$0xff]
    %v404 = vld [vmem:[#allocation3 + $0x28] sm:$0xff]
    %v406 = vsel %vm162, %v402, 0
    %408 = vmatprep.subr.mxu0 %v145
    %409 = vmatpush1.msra.mxu0 %v144
    %410 = vmatprep.subr.mxu0 %v147
    %411 = vmatpush1.msra.mxu0 %v146
    %412 = vmatprep.subr.mxu0 %v149
    %413 = vmatpush1.msra.mxu0 %v148
    %414 = vmatprep.subr.mxu0 %v151
    %415 = vmatpush1.msra.mxu0 %v150
    %416 = vmatprep.subr.mxu0 %v153
    %417 = vmatpush1.msra.mxu0 %v152
    %418 = vmatprep.subr.mxu0 %v155
    %419 = vmatpush1.msra.mxu0 %v154
    %420 = vmatprep.subr.mxu0 %v157
    %421 = vmatpush1.msra.mxu0 %v156
    %422 = vmatprep.subr.mxu0 %v159
    %423 = vmatpush1.msra.mxu0 %v158
    %424 = vmatprep.subr.mxu0 0.0
    %425 = vmatpush1.msra.mxu0 0.0
    %426 = vmatprep.subr.mxu0 0.0
    %427 = vmatpush1.msra.mxu0 0.0
    %428 = vmatprep.subr.mxu0 0.0
    %429 = vmatpush1.msra.mxu0 0.0
    %430 = vmatprep.subr.mxu0 0.0
    %431 = vmatpush1.msra.mxu0 0.0
    %432 = vmatprep.subr.mxu0 0.0
    %433 = vmatpush1.msra.mxu0 0.0
    %434 = vmatprep.subr.mxu0 0.0
    %435 = vmatpush1.msra.mxu0 0.0
    %436 = vmatprep.subr.mxu0 0.0
    %437 = vmatpush1.msra.mxu0 0.0
    %438 = vmatprep.subr.mxu0 0.0
    %439 = vmatpush1.msra.mxu0 0.0
    %440 = vmatprep.subr.mxu0 0.0
    %441 = vmatpush1.msra.mxu0 0.0
    %442 = vmatprep.subr.mxu0 0.0
    %443 = vmatpush1.msra.mxu0 0.0
    %444 = vmatprep.subr.mxu0 0.0
    %445 = vmatpush1.msra.mxu0 0.0
    %446 = vmatprep.subr.mxu0 0.0
    %447 = vmatpush1.msra.mxu0 0.0
    %448 = vmatprep.subr.mxu0 0.0
    %449 = vmatpush1.msra.mxu0 0.0
    %450 = vmatprep.subr.mxu0 0.0
    %451 = vmatpush1.msra.mxu0 0.0
    %452 = vmatprep.subr.mxu0 0.0
    %453 = vmatpush1.msra.mxu0 0.0
    %454 = vmatprep.subr.mxu0 0.0
    %455 = vmatpush1.msra.mxu0 0.0
    %456 = vmatprep.subr.mxu0 0.0
    %457 = vmatpush1.msra.mxu0 0.0
    %458 = vmatprep.subr.mxu0 0.0
    %459 = vmatpush1.msra.mxu0 0.0
    %460 = vmatprep.subr.mxu0 0.0
    %461 = vmatpush1.msra.mxu0 0.0
    %462 = vmatprep.subr.mxu0 0.0
    %463 = vmatpush1.msra.mxu0 0.0
    %464 = vmatprep.subr.mxu0 0.0
    %465 = vmatpush1.msra.mxu0 0.0
    %466 = vmatprep.subr.mxu0 0.0
    %467 = vmatpush1.msra.mxu0 0.0
    %468 = vmatprep.subr.mxu0 0.0
    %469 = vmatpush1.msra.mxu0 0.0
    %470 = vmatprep.subr.mxu0 0.0
    %471 = vmatpush1.msra.mxu0 0.0
    %472 = vmatprep.mubr.f32.mxu0 0.0
    %473 = vmatmul.mubr.f32.gmra.mrb[0].mxu0 %v406
    %v474 = vpop.f32.mrb[0].mxu0
    %v475 = vadd.f32 %v403, %v474
    %v476 = vpop.f32.mrb[0].mxu0
    %v477 = vadd.f32 %v404, %v476
    %478 = vdwg.mxu0
    %v479 = vxor.u32 %v475, 2147483648
    %v480 = vxor.u32 %v477, 2147483648
    %v481 = vmul.f32 %v479, 1.442695
    %v482 = vpow.pop %v481
    %v483 = vmul.f32 %v480, 1.442695
    %v484 = vpow.pop %v483
    %v485 = vadd.f32 %v482, 1.0
    %v486 = vadd.f32 %v484, 1.0
    %v487 = vrcp.pop %v485
    %v488 = vmul.f32 1.0, %v487
    %v489 = vrcp.pop %v486
    %v490 = vmul.f32 1.0, %v489
    %v491 = vtanh.pop %v475
    %v492 = vtanh.pop %v477
    %v493 = vmul.f32 %v488, %v366
    %495 = vrot.lane.b32.xlu0 %v491, 64
    %v496 = vpop.permute.xlu0 %495
    %v498 = vmul.f32 %v488, %v496
    %500 = vrot.lane.b32.xlu0 %v498, 32
    %v501 = vpop.permute.xlu0 %500
    %v503 = vadd.f32 %v493, %v501
    %v504 = vtanh.pop %v503
    %506 = vrot.lane.b32.xlu0 %v504, 64
    %v507 = vpop.permute.xlu0 %506
    %v509 = vmul.f32 %v488, %v507
    %v510 = vmul.f32 %v490, %v383
    %512 = vrot.lane.b32.xlu0 %v492, 64
    %v513 = vpop.permute.xlu0 %512
    %v515 = vmul.f32 %v490, %v513
    %517 = vrot.lane.b32.xlu0 %v515, 32
    %v518 = vpop.permute.xlu0 %517
    %v520 = vadd.f32 %v510, %v518
    %v521 = vtanh.pop %v520
    %523 = vrot.lane.b32.xlu0 %v521, 64
    %v524 = vpop.permute.xlu0 %523
    %v526 = vmul.f32 %v490, %v524
    %528 = vrot.lane.b32.xlu0 %v526, 32
    %v529 = vpop.permute.xlu0 %528
    %s531 = scalar_lea.vmem [#allocation2], 8
    %532 = vst.msk [vmem:[%s531] sm:$0xff] %vm264, %v529
    %534 = vrot.lane.b32.xlu0 %v509, 32
    %v535 = vpop.permute.xlu0 %534
    %537 = vrot.lane.b32.xlu0 %v526, 64
    %v538 = vpop.permute.xlu0 %537
    %v540 = vsel %vm264, %v535, %v538
    %v541 = vld [vmem:[#allocation3 + $0x30] sm:$0xff]
    %v542 = vld [vmem:[#allocation3 + $0x38] sm:$0xff]
    %v544 = vsel %vm162, %v540, 0
    %546 = vmatprep.subr.mxu0 %v145
    %547 = vmatpush1.msra.mxu0 %v144
    %548 = vmatprep.subr.mxu0 %v147
    %549 = vmatpush1.msra.mxu0 %v146
    %550 = vmatprep.subr.mxu0 %v149
    %551 = vmatpush1.msra.mxu0 %v148
    %552 = vmatprep.subr.mxu0 %v151
    %553 = vmatpush1.msra.mxu0 %v150
    %554 = vmatprep.subr.mxu0 %v153
    %555 = vmatpush1.msra.mxu0 %v152
    %556 = vmatprep.subr.mxu0 %v155
    %557 = vmatpush1.msra.mxu0 %v154
    %558 = vmatprep.subr.mxu0 %v157
    %559 = vmatpush1.msra.mxu0 %v156
    %560 = vmatprep.subr.mxu0 %v159
    %561 = vmatpush1.msra.mxu0 %v158
    %562 = vmatprep.subr.mxu0 0.0
    %563 = vmatpush1.msra.mxu0 0.0
    %564 = vmatprep.subr.mxu0 0.0
    %565 = vmatpush1.msra.mxu0 0.0
    %566 = vmatprep.subr.mxu0 0.0
    %567 = vmatpush1.msra.mxu0 0.0
    %568 = vmatprep.subr.mxu0 0.0
    %569 = vmatpush1.msra.mxu0 0.0
    %570 = vmatprep.subr.mxu0 0.0
    %571 = vmatpush1.msra.mxu0 0.0
    %572 = vmatprep.subr.mxu0 0.0
    %573 = vmatpush1.msra.mxu0 0.0
    %574 = vmatprep.subr.mxu0 0.0
    %575 = vmatpush1.msra.mxu0 0.0
    %576 = vmatprep.subr.mxu0 0.0
    %577 = vmatpush1.msra.mxu0 0.0
    %578 = vmatprep.subr.mxu0 0.0
    %579 = vmatpush1.msra.mxu0 0.0
    %580 = vmatprep.subr.mxu0 0.0
    %581 = vmatpush1.msra.mxu0 0.0
    %582 = vmatprep.subr.mxu0 0.0
    %583 = vmatpush1.msra.mxu0 0.0
    %584 = vmatprep.subr.mxu0 0.0
    %585 = vmatpush1.msra.mxu0 0.0
    %586 = vmatprep.subr.mxu0 0.0
    %587 = vmatpush1.msra.mxu0 0.0
    %588 = vmatprep.subr.mxu0 0.0
    %589 = vmatpush1.msra.mxu0 0.0
    %590 = vmatprep.subr.mxu0 0.0
    %591 = vmatpush1.msra.mxu0 0.0
    %592 = vmatprep.subr.mxu0 0.0
    %593 = vmatpush1.msra.mxu0 0.0
    %594 = vmatprep.subr.mxu0 0.0
    %595 = vmatpush1.msra.mxu0 0.0
    %596 = vmatprep.subr.mxu0 0.0
    %597 = vmatpush1.msra.mxu0 0.0
    %598 = vmatprep.subr.mxu0 0.0
    %599 = vmatpush1.msra.mxu0 0.0
    %600 = vmatprep.subr.mxu0 0.0
    %601 = vmatpush1.msra.mxu0 0.0
    %602 = vmatprep.subr.mxu0 0.0
    %603 = vmatpush1.msra.mxu0 0.0
    %604 = vmatprep.subr.mxu0 0.0
    %605 = vmatpush1.msra.mxu0 0.0
    %606 = vmatprep.subr.mxu0 0.0
    %607 = vmatpush1.msra.mxu0 0.0
    %608 = vmatprep.subr.mxu0 0.0
    %609 = vmatpush1.msra.mxu0 0.0
    %610 = vmatprep.mubr.f32.mxu0 0.0
    %611 = vmatmul.mubr.f32.gmra.mrb[0].mxu0 %v544
    %v612 = vpop.f32.mrb[0].mxu0
    %v613 = vadd.f32 %v541, %v612
    %v614 = vpop.f32.mrb[0].mxu0
    %v615 = vadd.f32 %v542, %v614
    %616 = vdwg.mxu0
    %v617 = vxor.u32 %v613, 2147483648
    %v618 = vxor.u32 %v615, 2147483648
    %v619 = vmul.f32 %v617, 1.442695
    %v620 = vpow.pop %v619
    %v621 = vmul.f32 %v618, 1.442695
    %v622 = vpow.pop %v621
    %v623 = vadd.f32 %v620, 1.0
    %v624 = vadd.f32 %v622, 1.0
    %v625 = vrcp.pop %v623
    %v626 = vmul.f32 1.0, %v625
    %v627 = vrcp.pop %v624
    %v628 = vmul.f32 1.0, %v627
    %v629 = vtanh.pop %v613
    %v630 = vtanh.pop %v615
    %v631 = vmul.f32 %v626, %v503
    %633 = vrot.lane.b32.xlu0 %v629, 64
    %v634 = vpop.permute.xlu0 %633
    %v636 = vmul.f32 %v626, %v634
    %638 = vrot.lane.b32.xlu0 %v636, 32
    %v639 = vpop.permute.xlu0 %638
    %v641 = vadd.f32 %v631, %v639
    %v642 = vtanh.pop %v641
    %644 = vrot.lane.b32.xlu0 %v642, 64
    %v645 = vpop.permute.xlu0 %644
    %v647 = vmul.f32 %v626, %v645
    %v648 = vmul.f32 %v628, %v520
    %650 = vrot.lane.b32.xlu0 %v630, 64
    %v651 = vpop.permute.xlu0 %650
    %v653 = vmul.f32 %v628, %v651
    %655 = vrot.lane.b32.xlu0 %v653, 32
    %v656 = vpop.permute.xlu0 %655
    %v658 = vadd.f32 %v648, %v656
    %v659 = vtanh.pop %v658
    %661 = vrot.lane.b32.xlu0 %v659, 64
    %v662 = vpop.permute.xlu0 %661
    %v664 = vmul.f32 %v628, %v662
    %666 = vrot.lane.b32.xlu0 %v664, 32
    %v667 = vpop.permute.xlu0 %666
    %s669 = scalar_lea.vmem [#allocation2], 16
    %670 = vst.msk [vmem:[%s669] sm:$0xff] %vm264, %v667
    %672 = vrot.lane.b32.xlu0 %v647, 32
    %v673 = vpop.permute.xlu0 %672
    %675 = vrot.lane.b32.xlu0 %v664, 64
    %v676 = vpop.permute.xlu0 %675
    %v678 = vsel %vm264, %v673, %v676
    %v679 = vld [vmem:[#allocation3 + $0x40] sm:$0xff]
    %v680 = vld [vmem:[#allocation3 + $0x48] sm:$0xff]
    %v682 = vsel %vm162, %v678, 0
    %684 = vmatprep.subr.mxu0 %v145
    %685 = vmatpush1.msra.mxu0 %v144
    %686 = vmatprep.subr.mxu0 %v147
    %687 = vmatpush1.msra.mxu0 %v146
    %688 = vmatprep.subr.mxu0 %v149
    %689 = vmatpush1.msra.mxu0 %v148
    %690 = vmatprep.subr.mxu0 %v151
    %691 = vmatpush1.msra.mxu0 %v150
    %692 = vmatprep.subr.mxu0 %v153
    %693 = vmatpush1.msra.mxu0 %v152
    %694 = vmatprep.subr.mxu0 %v155
    %695 = vmatpush1.msra.mxu0 %v154
    %696 = vmatprep.subr.mxu0 %v157
    %697 = vmatpush1.msra.mxu0 %v156
    %698 = vmatprep.subr.mxu0 %v159
    %699 = vmatpush1.msra.mxu0 %v158
    %700 = vmatprep.subr.mxu0 0.0
    %701 = vmatpush1.msra.mxu0 0.0
    %702 = vmatprep.subr.mxu0 0.0
    %703 = vmatpush1.msra.mxu0 0.0
    %704 = vmatprep.subr.mxu0 0.0
    %705 = vmatpush1.msra.mxu0 0.0
    %706 = vmatprep.subr.mxu0 0.0
    %707 = vmatpush1.msra.mxu0 0.0
    %708 = vmatprep.subr.mxu0 0.0
    %709 = vmatpush1.msra.mxu0 0.0
    %710 = vmatprep.subr.mxu0 0.0
    %711 = vmatpush1.msra.mxu0 0.0
    %712 = vmatprep.subr.mxu0 0.0
    %713 = vmatpush1.msra.mxu0 0.0
    %714 = vmatprep.subr.mxu0 0.0
    %715 = vmatpush1.msra.mxu0 0.0
    %716 = vmatprep.subr.mxu0 0.0
    %717 = vmatpush1.msra.mxu0 0.0
    %718 = vmatprep.subr.mxu0 0.0
    %719 = vmatpush1.msra.mxu0 0.0
    %720 = vmatprep.subr.mxu0 0.0
    %721 = vmatpush1.msra.mxu0 0.0
    %722 = vmatprep.subr.mxu0 0.0
    %723 = vmatpush1.msra.mxu0 0.0
    %724 = vmatprep.subr.mxu0 0.0
    %725 = vmatpush1.msra.mxu0 0.0
    %726 = vmatprep.subr.mxu0 0.0
    %727 = vmatpush1.msra.mxu0 0.0
    %728 = vmatprep.subr.mxu0 0.0
    %729 = vmatpush1.msra.mxu0 0.0
    %730 = vmatprep.subr.mxu0 0.0
    %731 = vmatpush1.msra.mxu0 0.0
    %732 = vmatprep.subr.mxu0 0.0
    %733 = vmatpush1.msra.mxu0 0.0
    %734 = vmatprep.subr.mxu0 0.0
    %735 = vmatpush1.msra.mxu0 0.0
    %736 = vmatprep.subr.mxu0 0.0
    %737 = vmatpush1.msra.mxu0 0.0
    %738 = vmatprep.subr.mxu0 0.0
    %739 = vmatpush1.msra.mxu0 0.0
    %740 = vmatprep.subr.mxu0 0.0
    %741 = vmatpush1.msra.mxu0 0.0
    %742 = vmatprep.subr.mxu0 0.0
    %743 = vmatpush1.msra.mxu0 0.0
    %744 = vmatprep.subr.mxu0 0.0
    %745 = vmatpush1.msra.mxu0 0.0
    %746 = vmatprep.subr.mxu0 0.0
    %747 = vmatpush1.msra.mxu0 0.0
    %748 = vmatprep.mubr.f32.mxu0 0.0
    %749 = vmatmul.mubr.f32.gmra.mrb[0].mxu0 %v682
    %v750 = vpop.f32.mrb[0].mxu0
    %v751 = vadd.f32 %v679, %v750
    %v752 = vpop.f32.mrb[0].mxu0
    %v753 = vadd.f32 %v680, %v752
    %754 = vdwg.mxu0
    %v755 = vxor.u32 %v751, 2147483648
    %v756 = vxor.u32 %v753, 2147483648
    %v757 = vmul.f32 %v755, 1.442695
    %v758 = vpow.pop %v757
    %v759 = vmul.f32 %v756, 1.442695
    %v760 = vpow.pop %v759
    %v761 = vadd.f32 %v758, 1.0
    %v762 = vadd.f32 %v760, 1.0
    %v763 = vrcp.pop %v761
    %v764 = vmul.f32 1.0, %v763
    %v765 = vrcp.pop %v762
    %v766 = vmul.f32 1.0, %v765
    %v767 = vtanh.pop %v751
    %v768 = vtanh.pop %v753
    %v769 = vmul.f32 %v764, %v641
    %771 = vrot.lane.b32.xlu0 %v767, 64
    %v772 = vpop.permute.xlu0 %771
    %v774 = vmul.f32 %v764, %v772
    %776 = vrot.lane.b32.xlu0 %v774, 32
    %v777 = vpop.permute.xlu0 %776
    %v779 = vadd.f32 %v769, %v777
    %v780 = vtanh.pop %v779
    %782 = vrot.lane.b32.xlu0 %v780, 64
    %v783 = vpop.permute.xlu0 %782
    %v785 = vmul.f32 %v764, %v783
    %v786 = vmul.f32 %v766, %v658
    %788 = vrot.lane.b32.xlu0 %v768, 64
    %v789 = vpop.permute.xlu0 %788
    %v791 = vmul.f32 %v766, %v789
    %793 = vrot.lane.b32.xlu0 %v791, 32
    %v794 = vpop.permute.xlu0 %793
    %v796 = vadd.f32 %v786, %v794
    %v797 = vtanh.pop %v796
    %799 = vrot.lane.b32.xlu0 %v797, 64
    %v800 = vpop.permute.xlu0 %799
    %v802 = vmul.f32 %v766, %v800
    %804 = vrot.lane.b32.xlu0 %v802, 32
    %v805 = vpop.permute.xlu0 %804
    %s807 = scalar_lea.vmem [#allocation2], 24
    %808 = vst.msk [vmem:[%s807] sm:$0xff] %vm264, %v805
    %810 = vrot.lane.b32.xlu0 %v785, 32
    %v811 = vpop.permute.xlu0 %810
    %813 = vrot.lane.b32.xlu0 %v802, 64
    %v814 = vpop.permute.xlu0 %813
    %v816 = vsel %vm264, %v811, %v814
    %v817 = vld [vmem:[#allocation3 + $0x50] sm:$0xff]
    %v818 = vld [vmem:[#allocation3 + $0x58] sm:$0xff]
    %v820 = vsel %vm162, %v816, 0
    %822 = vmatprep.subr.mxu0 %v145
    %823 = vmatpush1.msra.mxu0 %v144
    %824 = vmatprep.subr.mxu0 %v147
    %825 = vmatpush1.msra.mxu0 %v146
    %826 = vmatprep.subr.mxu0 %v149
    %827 = vmatpush1.msra.mxu0 %v148
    %828 = vmatprep.subr.mxu0 %v151
    %829 = vmatpush1.msra.mxu0 %v150
    %830 = vmatprep.subr.mxu0 %v153
    %831 = vmatpush1.msra.mxu0 %v152
    %832 = vmatprep.subr.mxu0 %v155
    %833 = vmatpush1.msra.mxu0 %v154
    %834 = vmatprep.subr.mxu0 %v157
    %835 = vmatpush1.msra.mxu0 %v156
    %836 = vmatprep.subr.mxu0 %v159
    %837 = vmatpush1.msra.mxu0 %v158
    %838 = vmatprep.subr.mxu0 0.0
    %839 = vmatpush1.msra.mxu0 0.0
    %840 = vmatprep.subr.mxu0 0.0
    %841 = vmatpush1.msra.mxu0 0.0
    %842 = vmatprep.subr.mxu0 0.0
    %843 = vmatpush1.msra.mxu0 0.0
    %844 = vmatprep.subr.mxu0 0.0
    %845 = vmatpush1.msra.mxu0 0.0
    %846 = vmatprep.subr.mxu0 0.0
    %847 = vmatpush1.msra.mxu0 0.0
    %848 = vmatprep.subr.mxu0 0.0
    %849 = vmatpush1.msra.mxu0 0.0
    %850 = vmatprep.subr.mxu0 0.0
    %851 = vmatpush1.msra.mxu0 0.0
    %852 = vmatprep.subr.mxu0 0.0
    %853 = vmatpush1.msra.mxu0 0.0
    %854 = vmatprep.subr.mxu0 0.0
    %855 = vmatpush1.msra.mxu0 0.0
    %856 = vmatprep.subr.mxu0 0.0
    %857 = vmatpush1.msra.mxu0 0.0
    %858 = vmatprep.subr.mxu0 0.0
    %859 = vmatpush1.msra.mxu0 0.0
    %860 = vmatprep.subr.mxu0 0.0
    %861 = vmatpush1.msra.mxu0 0.0
    %862 = vmatprep.subr.mxu0 0.0
    %863 = vmatpush1.msra.mxu0 0.0
    %864 = vmatprep.subr.mxu0 0.0
    %865 = vmatpush1.msra.mxu0 0.0
    %866 = vmatprep.subr.mxu0 0.0
    %867 = vmatpush1.msra.mxu0 0.0
    %868 = vmatprep.subr.mxu0 0.0
    %869 = vmatpush1.msra.mxu0 0.0
    %870 = vmatprep.subr.mxu0 0.0
    %871 = vmatpush1.msra.mxu0 0.0
    %872 = vmatprep.subr.mxu0 0.0
    %873 = vmatpush1.msra.mxu0 0.0
    %874 = vmatprep.subr.mxu0 0.0
    %875 = vmatpush1.msra.mxu0 0.0
    %876 = vmatprep.subr.mxu0 0.0
    %877 = vmatpush1.msra.mxu0 0.0
    %878 = vmatprep.subr.mxu0 0.0
    %879 = vmatpush1.msra.mxu0 0.0
    %880 = vmatprep.subr.mxu0 0.0
    %881 = vmatpush1.msra.mxu0 0.0
    %882 = vmatprep.subr.mxu0 0.0
    %883 = vmatpush1.msra.mxu0 0.0
    %884 = vmatprep.subr.mxu0 0.0
    %885 = vmatpush1.msra.mxu0 0.0
    %886 = vmatprep.mubr.f32.mxu0 0.0
    %887 = vmatmul.mubr.f32.gmra.mrb[0].mxu0 %v820
    %v888 = vpop.f32.mrb[0].mxu0
    %v889 = vadd.f32 %v817, %v888
    %v890 = vpop.f32.mrb[0].mxu0
    %v891 = vadd.f32 %v818, %v890
    %892 = vdwg.mxu0
    %v893 = vxor.u32 %v889, 2147483648
    %v894 = vxor.u32 %v891, 2147483648
    %v895 = vmul.f32 %v893, 1.442695
    %v896 = vpow.pop %v895
    %v897 = vmul.f32 %v894, 1.442695
    %v898 = vpow.pop %v897
    %v899 = vadd.f32 %v896, 1.0
    %v900 = vadd.f32 %v898, 1.0
    %v901 = vrcp.pop %v899
    %v902 = vmul.f32 1.0, %v901
    %v903 = vrcp.pop %v900
    %v904 = vmul.f32 1.0, %v903
    %v905 = vtanh.pop %v889
    %v906 = vtanh.pop %v891
    %v907 = vmul.f32 %v902, %v779
    %909 = vrot.lane.b32.xlu0 %v905, 64
    %v910 = vpop.permute.xlu0 %909
    %v912 = vmul.f32 %v902, %v910
    %914 = vrot.lane.b32.xlu0 %v912, 32
    %v915 = vpop.permute.xlu0 %914
    %v917 = vadd.f32 %v907, %v915
    %v918 = vtanh.pop %v917
    %920 = vrot.lane.b32.xlu0 %v918, 64
    %v921 = vpop.permute.xlu0 %920
    %v923 = vmul.f32 %v902, %v921
    %v924 = vmul.f32 %v904, %v796
    %926 = vrot.lane.b32.xlu0 %v906, 64
    %v927 = vpop.permute.xlu0 %926
    %v929 = vmul.f32 %v904, %v927
    %931 = vrot.lane.b32.xlu0 %v929, 32
    %v932 = vpop.permute.xlu0 %931
    %v934 = vadd.f32 %v924, %v932
    %v935 = vtanh.pop %v934
    %937 = vrot.lane.b32.xlu0 %v935, 64
    %v938 = vpop.permute.xlu0 %937
    %v940 = vmul.f32 %v904, %v938
    %942 = vrot.lane.b32.xlu0 %v940, 32
    %v943 = vpop.permute.xlu0 %942
    %s945 = scalar_lea.vmem [#allocation2], 32
    %946 = vst.msk [vmem:[%s945] sm:$0xff] %vm264, %v943
    %948 = vrot.lane.b32.xlu0 %v923, 32
    %v949 = vpop.permute.xlu0 %948
    %951 = vrot.lane.b32.xlu0 %v940, 64
    %v952 = vpop.permute.xlu0 %951
    %v954 = vsel %vm264, %v949, %v952
    %v955 = vld [vmem:[#allocation3 + $0x60] sm:$0xff]
    %v956 = vld [vmem:[#allocation3 + $0x68] sm:$0xff]
    %v958 = vsel %vm162, %v954, 0
    %960 = vmatprep.subr.mxu0 %v145
    %961 = vmatpush1.msra.mxu0 %v144
    %962 = vmatprep.subr.mxu0 %v147
    %963 = vmatpush1.msra.mxu0 %v146
    %964 = vmatprep.subr.mxu0 %v149
    %965 = vmatpush1.msra.mxu0 %v148
    %966 = vmatprep.subr.mxu0 %v151
    %967 = vmatpush1.msra.mxu0 %v150
    %968 = vmatprep.subr.mxu0 %v153
    %969 = vmatpush1.msra.mxu0 %v152
    %970 = vmatprep.subr.mxu0 %v155
    %971 = vmatpush1.msra.mxu0 %v154
    %972 = vmatprep.subr.mxu0 %v157
    %973 = vmatpush1.msra.mxu0 %v156
    %974 = vmatprep.subr.mxu0 %v159
    %975 = vmatpush1.msra.mxu0 %v158
    %976 = vmatprep.subr.mxu0 0.0
    %977 = vmatpush1.msra.mxu0 0.0
    %978 = vmatprep.subr.mxu0 0.0
    %979 = vmatpush1.msra.mxu0 0.0
    %980 = vmatprep.subr.mxu0 0.0
    %981 = vmatpush1.msra.mxu0 0.0
    %982 = vmatprep.subr.mxu0 0.0
    %983 = vmatpush1.msra.mxu0 0.0
    %984 = vmatprep.subr.mxu0 0.0
    %985 = vmatpush1.msra.mxu0 0.0
    %986 = vmatprep.subr.mxu0 0.0
    %987 = vmatpush1.msra.mxu0 0.0
    %988 = vmatprep.subr.mxu0 0.0
    %989 = vmatpush1.msra.mxu0 0.0
    %990 = vmatprep.subr.mxu0 0.0
    %991 = vmatpush1.msra.mxu0 0.0
    %992 = vmatprep.subr.mxu0 0.0
    %993 = vmatpush1.msra.mxu0 0.0
    %994 = vmatprep.subr.mxu0 0.0
    %995 = vmatpush1.msra.mxu0 0.0
    %996 = vmatprep.subr.mxu0 0.0
    %997 = vmatpush1.msra.mxu0 0.0
    %998 = vmatprep.subr.mxu0 0.0
    %999 = vmatpush1.msra.mxu0 0.0
    %1000 = vmatprep.subr.mxu0 0.0
    %1001 = vmatpush1.msra.mxu0 0.0
    %1002 = vmatprep.subr.mxu0 0.0
    %1003 = vmatpush1.msra.mxu0 0.0
    %1004 = vmatprep.subr.mxu0 0.0
    %1005 = vmatpush1.msra.mxu0 0.0
    %1006 = vmatprep.subr.mxu0 0.0
    %1007 = vmatpush1.msra.mxu0 0.0
    %1008 = vmatprep.subr.mxu0 0.0
    %1009 = vmatpush1.msra.mxu0 0.0
    %1010 = vmatprep.subr.mxu0 0.0
    %1011 = vmatpush1.msra.mxu0 0.0
    %1012 = vmatprep.subr.mxu0 0.0
    %1013 = vmatpush1.msra.mxu0 0.0
    %1014 = vmatprep.subr.mxu0 0.0
    %1015 = vmatpush1.msra.mxu0 0.0
    %1016 = vmatprep.subr.mxu0 0.0
    %1017 = vmatpush1.msra.mxu0 0.0
    %1018 = vmatprep.subr.mxu0 0.0
    %1019 = vmatpush1.msra.mxu0 0.0
    %1020 = vmatprep.subr.mxu0 0.0
    %1021 = vmatpush1.msra.mxu0 0.0
    %1022 = vmatprep.subr.mxu0 0.0
    %1023 = vmatpush1.msra.mxu0 0.0
    %1024 = vmatprep.mubr.f32.mxu0 0.0
    %1025 = vmatmul.mubr.f32.gmra.mrb[0].mxu0 %v958
    %v1026 = vpop.f32.mrb[0].mxu0
    %v1027 = vadd.f32 %v955, %v1026
    %v1028 = vpop.f32.mrb[0].mxu0
    %v1029 = vadd.f32 %v956, %v1028
    %1030 = vdwg.mxu0
    %v1031 = vxor.u32 %v1027, 2147483648
    %v1032 = vxor.u32 %v1029, 2147483648
    %v1033 = vmul.f32 %v1031, 1.442695
    %v1034 = vpow.pop %v1033
    %v1035 = vmul.f32 %v1032, 1.442695
    %v1036 = vpow.pop %v1035
    %v1037 = vadd.f32 %v1034, 1.0
    %v1038 = vadd.f32 %v1036, 1.0
    %v1039 = vrcp.pop %v1037
    %v1040 = vmul.f32 1.0, %v1039
    %v1041 = vrcp.pop %v1038
    %v1042 = vmul.f32 1.0, %v1041
    %v1043 = vtanh.pop %v1027
    %v1044 = vtanh.pop %v1029
    %v1045 = vmul.f32 %v1040, %v917
    %1047 = vrot.lane.b32.xlu0 %v1043, 64
    %v1048 = vpop.permute.xlu0 %1047
    %v1050 = vmul.f32 %v1040, %v1048
    %1052 = vrot.lane.b32.xlu0 %v1050, 32
    %v1053 = vpop.permute.xlu0 %1052
    %v1055 = vadd.f32 %v1045, %v1053
    %v1056 = vtanh.pop %v1055
    %1058 = vrot.lane.b32.xlu0 %v1056, 64
    %v1059 = vpop.permute.xlu0 %1058
    %v1061 = vmul.f32 %v1040, %v1059
    %v1062 = vmul.f32 %v1042, %v934
    %1064 = vrot.lane.b32.xlu0 %v1044, 64
    %v1065 = vpop.permute.xlu0 %1064
    %v1067 = vmul.f32 %v1042, %v1065
    %1069 = vrot.lane.b32.xlu0 %v1067, 32
    %v1070 = vpop.permute.xlu0 %1069
    %v1072 = vadd.f32 %v1062, %v1070
    %v1073 = vtanh.pop %v1072
    %1075 = vrot.lane.b32.xlu0 %v1073, 64
    %v1076 = vpop.permute.xlu0 %1075
    %v1078 = vmul.f32 %v1042, %v1076
    %1080 = vrot.lane.b32.xlu0 %v1078, 32
    %v1081 = vpop.permute.xlu0 %1080
    %s1083 = scalar_lea.vmem [#allocation2], 40
    %1084 = vst.msk [vmem:[%s1083] sm:$0xff] %vm264, %v1081
    %1086 = vrot.lane.b32.xlu0 %v1061, 32
    %v1087 = vpop.permute.xlu0 %1086
    %1089 = vrot.lane.b32.xlu0 %v1078, 64
    %v1090 = vpop.permute.xlu0 %1089
    %v1092 = vsel %vm264, %v1087, %v1090
    %v1093 = vld [vmem:[#allocation3 + $0x70] sm:$0xff]
    %v1094 = vld [vmem:[#allocation3 + $0x78] sm:$0xff]
    %v1096 = vsel %vm162, %v1092, 0
    %1098 = vmatprep.subr.mxu0 %v145
    %1099 = vmatpush1.msra.mxu0 %v144
    %1100 = vmatprep.subr.mxu0 %v147
    %1101 = vmatpush1.msra.mxu0 %v146
    %1102 = vmatprep.subr.mxu0 %v149
    %1103 = vmatpush1.msra.mxu0 %v148
    %1104 = vmatprep.subr.mxu0 %v151
    %1105 = vmatpush1.msra.mxu0 %v150
    %1106 = vmatprep.subr.mxu0 %v153
    %1107 = vmatpush1.msra.mxu0 %v152
    %1108 = vmatprep.subr.mxu0 %v155
    %1109 = vmatpush1.msra.mxu0 %v154
    %1110 = vmatprep.subr.mxu0 %v157
    %1111 = vmatpush1.msra.mxu0 %v156
    %1112 = vmatprep.subr.mxu0 %v159
    %1113 = vmatpush1.msra.mxu0 %v158
    %1114 = vmatprep.subr.mxu0 0.0
    %1115 = vmatpush1.msra.mxu0 0.0
    %1116 = vmatprep.subr.mxu0 0.0
    %1117 = vmatpush1.msra.mxu0 0.0
    %1118 = vmatprep.subr.mxu0 0.0
    %1119 = vmatpush1.msra.mxu0 0.0
    %1120 = vmatprep.subr.mxu0 0.0
    %1121 = vmatpush1.msra.mxu0 0.0
    %1122 = vmatprep.subr.mxu0 0.0
    %1123 = vmatpush1.msra.mxu0 0.0
    %1124 = vmatprep.subr.mxu0 0.0
    %1125 = vmatpush1.msra.mxu0 0.0
    %1126 = vmatprep.subr.mxu0 0.0
    %1127 = vmatpush1.msra.mxu0 0.0
    %1128 = vmatprep.subr.mxu0 0.0
    %1129 = vmatpush1.msra.mxu0 0.0
    %1130 = vmatprep.subr.mxu0 0.0
    %1131 = vmatpush1.msra.mxu0 0.0
    %1132 = vmatprep.subr.mxu0 0.0
    %1133 = vmatpush1.msra.mxu0 0.0
    %1134 = vmatprep.subr.mxu0 0.0
    %1135 = vmatpush1.msra.mxu0 0.0
    %1136 = vmatprep.subr.mxu0 0.0
    %1137 = vmatpush1.msra.mxu0 0.0
    %1138 = vmatprep.subr.mxu0 0.0
    %1139 = vmatpush1.msra.mxu0 0.0
    %1140 = vmatprep.subr.mxu0 0.0
    %1141 = vmatpush1.msra.mxu0 0.0
    %1142 = vmatprep.subr.mxu0 0.0
    %1143 = vmatpush1.msra.mxu0 0.0
    %1144 = vmatprep.subr.mxu0 0.0
    %1145 = vmatpush1.msra.mxu0 0.0
    %1146 = vmatprep.subr.mxu0 0.0
    %1147 = vmatpush1.msra.mxu0 0.0
    %1148 = vmatprep.subr.mxu0 0.0
    %1149 = vmatpush1.msra.mxu0 0.0
    %1150 = vmatprep.subr.mxu0 0.0
    %1151 = vmatpush1.msra.mxu0 0.0
    %1152 = vmatprep.subr.mxu0 0.0
    %1153 = vmatpush1.msra.mxu0 0.0
    %1154 = vmatprep.subr.mxu0 0.0
    %1155 = vmatpush1.msra.mxu0 0.0
    %1156 = vmatprep.subr.mxu0 0.0
    %1157 = vmatpush1.msra.mxu0 0.0
    %1158 = vmatprep.subr.mxu0 0.0
    %1159 = vmatpush1.msra.mxu0 0.0
    %1160 = vmatprep.subr.mxu0 0.0
    %1161 = vmatpush1.msra.mxu0 0.0
    %1162 = vmatprep.mubr.f32.mxu0 0.0
    %1163 = vmatmul.mubr.f32.gmra.mrb[0].mxu0 %v1096
    %v1164 = vpop.f32.mrb[0].mxu0
    %v1165 = vadd.f32 %v1093, %v1164
    %v1166 = vpop.f32.mrb[0].mxu0
    %v1167 = vadd.f32 %v1094, %v1166
    %1168 = vdwg.mxu0
    %v1169 = vxor.u32 %v1165, 2147483648
    %v1170 = vxor.u32 %v1167, 2147483648
    %v1171 = vmul.f32 %v1169, 1.442695
    %v1172 = vpow.pop %v1171
    %v1173 = vmul.f32 %v1170, 1.442695
    %v1174 = vpow.pop %v1173
    %v1175 = vadd.f32 %v1172, 1.0
    %v1176 = vadd.f32 %v1174, 1.0
    %v1177 = vrcp.pop %v1175
    %v1178 = vmul.f32 1.0, %v1177
    %v1179 = vrcp.pop %v1176
    %v1180 = vmul.f32 1.0, %v1179
    %v1181 = vtanh.pop %v1165
    %v1182 = vtanh.pop %v1167
    %v1183 = vmul.f32 %v1178, %v1055
    %1185 = vrot.lane.b32.xlu0 %v1181, 64
    %v1186 = vpop.permute.xlu0 %1185
    %v1188 = vmul.f32 %v1178, %v1186
    %1190 = vrot.lane.b32.xlu0 %v1188, 32
    %v1191 = vpop.permute.xlu0 %1190
    %v1193 = vadd.f32 %v1183, %v1191
    %v1194 = vtanh.pop %v1193
    %1196 = vrot.lane.b32.xlu0 %v1194, 64
    %v1197 = vpop.permute.xlu0 %1196
    %v1199 = vmul.f32 %v1178, %v1197
    %v1200 = vmul.f32 %v1180, %v1072
    %1202 = vrot.lane.b32.xlu0 %v1182, 64
    %v1203 = vpop.permute.xlu0 %1202
    %v1205 = vmul.f32 %v1180, %v1203
    %1207 = vrot.lane.b32.xlu0 %v1205, 32
    %v1208 = vpop.permute.xlu0 %1207
    %v1210 = vadd.f32 %v1200, %v1208
    %v1211 = vtanh.pop %v1210
    %1213 = vrot.lane.b32.xlu0 %v1211, 64
    %v1214 = vpop.permute.xlu0 %1213
    %v1216 = vmul.f32 %v1180, %v1214
    %1218 = vrot.lane.b32.xlu0 %v1216, 32
    %v1219 = vpop.permute.xlu0 %1218
    %s1221 = scalar_lea.vmem [#allocation2], 48
    %1222 = vst.msk [vmem:[%s1221] sm:$0xff] %vm264, %v1219
    %1224 = vrot.lane.b32.xlu0 %v1199, 32
    %v1225 = vpop.permute.xlu0 %1224
    %1227 = vrot.lane.b32.xlu0 %v1216, 64
    %v1228 = vpop.permute.xlu0 %1227
    %v1230 = vsel %vm264, %v1225, %v1228
    %v1232 = vlaneseq
    %v1233 = vshrl.u32 %v1232, 7
    %v1234 = vsub.s32 1, %v1233
    %v1235 = vrot.slane %v160, %v1234
    %v1238 = vsel %vm162, %v1230, 0
    %1240 = vmatprep.subr.mxu0 %v145
    %1241 = vmatpush1.msra.mxu0 %v144
    %1242 = vmatprep.subr.mxu0 %v147
    %1243 = vmatpush1.msra.mxu0 %v146
    %1244 = vmatprep.subr.mxu0 %v149
    %1245 = vmatpush1.msra.mxu0 %v148
    %1246 = vmatprep.subr.mxu0 %v151
    %1247 = vmatpush1.msra.mxu0 %v150
    %1248 = vmatprep.subr.mxu0 %v153
    %1249 = vmatpush1.msra.mxu0 %v152
    %1250 = vmatprep.subr.mxu0 %v155
    %1251 = vmatpush1.msra.mxu0 %v154
    %1252 = vmatprep.subr.mxu0 %v157
    %1253 = vmatpush1.msra.mxu0 %v156
    %1254 = vmatprep.subr.mxu0 %v159
    %1255 = vmatpush1.msra.mxu0 %v158
    %1256 = vmatprep.subr.mxu0 0.0
    %1257 = vmatpush1.msra.mxu0 0.0
    %1258 = vmatprep.subr.mxu0 0.0
    %1259 = vmatpush1.msra.mxu0 0.0
    %1260 = vmatprep.subr.mxu0 0.0
    %1261 = vmatpush1.msra.mxu0 0.0
    %1262 = vmatprep.subr.mxu0 0.0
    %1263 = vmatpush1.msra.mxu0 0.0
    %1264 = vmatprep.subr.mxu0 0.0
    %1265 = vmatpush1.msra.mxu0 0.0
    %1266 = vmatprep.subr.mxu0 0.0
    %1267 = vmatpush1.msra.mxu0 0.0
    %1268 = vmatprep.subr.mxu0 0.0
    %1269 = vmatpush1.msra.mxu0 0.0
    %1270 = vmatprep.subr.mxu0 0.0
    %1271 = vmatpush1.msra.mxu0 0.0
    %1272 = vmatprep.subr.mxu0 0.0
    %1273 = vmatpush1.msra.mxu0 0.0
    %1274 = vmatprep.subr.mxu0 0.0
    %1275 = vmatpush1.msra.mxu0 0.0
    %1276 = vmatprep.subr.mxu0 0.0
    %1277 = vmatpush1.msra.mxu0 0.0
    %1278 = vmatprep.subr.mxu0 0.0
    %1279 = vmatpush1.msra.mxu0 0.0
    %1280 = vmatprep.subr.mxu0 0.0
    %1281 = vmatpush1.msra.mxu0 0.0
    %1282 = vmatprep.subr.mxu0 0.0
    %1283 = vmatpush1.msra.mxu0 0.0
    %1284 = vmatprep.subr.mxu0 0.0
    %1285 = vmatpush1.msra.mxu0 0.0
    %1286 = vmatprep.subr.mxu0 0.0
    %1287 = vmatpush1.msra.mxu0 0.0
    %1288 = vmatprep.subr.mxu0 0.0
    %1289 = vmatpush1.msra.mxu0 0.0
    %1290 = vmatprep.subr.mxu0 0.0
    %1291 = vmatpush1.msra.mxu0 0.0
    %1292 = vmatprep.subr.mxu0 0.0
    %1293 = vmatpush1.msra.mxu0 0.0
    %1294 = vmatprep.subr.mxu0 0.0
    %1295 = vmatpush1.msra.mxu0 0.0
    %1296 = vmatprep.subr.mxu0 0.0
    %1297 = vmatpush1.msra.mxu0 0.0
    %1298 = vmatprep.subr.mxu0 0.0
    %1299 = vmatpush1.msra.mxu0 0.0
    %1300 = vmatprep.subr.mxu0 0.0
    %1301 = vmatpush1.msra.mxu0 0.0
    %1302 = vmatprep.subr.mxu0 0.0
    %1303 = vmatpush1.msra.mxu0 0.0
    %1304 = vmatprep.mubr.f32.mxu0 0.0
    %1305 = vmatmul.mubr.f32.gmra.mrb[0].mxu0 %v1238
    %v1306 = vpop.f32.mrb[0].mxu0
    %v1307 = vpop.f32.mrb[0].mxu0
    %v1308 = vadd.f32 %v1235, %v1307
    %1309 = vdwg.mxu0
    %v1310 = vxor.u32 %v1308, 2147483648
    %v1311 = vmul.f32 %v1310, 1.442695
    %v1312 = vpow.pop %v1311
    %v1313 = vadd.f32 %v1312, 1.0
    %v1314 = vrcp.pop %v1313
    %v1315 = vmul.f32 1.0, %v1314
    %v1316 = vtanh.pop %v1308
    %v1317 = vmul.f32 %v1315, %v1210
    %1319 = vrot.lane.b32.xlu0 %v1316, 64
    %v1320 = vpop.permute.xlu0 %1319
    %v1322 = vmul.f32 %v1315, %v1320
    %1324 = vrot.lane.b32.xlu0 %v1322, 32
    %v1325 = vpop.permute.xlu0 %1324
    %v1327 = vadd.f32 %v1317, %v1325
    %v1328 = vtanh.pop %v1327
    %1330 = vrot.lane.b32.xlu0 %v1328, 64
    %v1331 = vpop.permute.xlu0 %1330
    %v1333 = vmul.f32 %v1315, %v1331
    %1335 = vrot.lane.b32.xlu0 %v1333, 32
    %v1336 = vpop.permute.xlu0 %1335
    %s1338 = scalar_lea.vmem [#allocation2], 56
    %1339 = vst.msk [vmem:[%s1338] sm:$0xff] %vm264, %v1336
    %v1340 = vld [vmem:[#allocation2] sm:$0xff]
    %v1341 = vld [vmem:[#allocation2 + $0x8] sm:$0xff]
    %v1342 = vld [vmem:[#allocation2 + $0x10] sm:$0xff]
    %v1343 = vld [vmem:[#allocation2 + $0x18] sm:$0xff]
    %v1344 = vld [vmem:[#allocation2 + $0x20] sm:$0xff]
    %v1345 = vld [vmem:[#allocation2 + $0x28] sm:$0xff]
    %v1346 = vld [vmem:[#allocation2 + $0x30] sm:$0xff]
    %v1347 = vld [vmem:[#allocation2 + $0x38] sm:$0xff]
    %v1348 = vld [vmem:[%s4] sm:$0x1]
    %v1350 = vlaneseq
    %v1351 = vshrl.u32 %v1350, 7
    %v1352 = vsub.s32 0, %v1351
    %v1353 = vrot.slane %v1348, %v1352
    %v1355 = vmul.f32 %v1340, %v1353
    %v1356 = vmul.f32 %v1341, %v1353
    %v1357 = vmul.f32 %v1342, %v1353
    %v1358 = vmul.f32 %v1343, %v1353
    %v1359 = vmul.f32 %v1344, %v1353
    %v1360 = vmul.f32 %v1345, %v1353
    %v1361 = vmul.f32 %v1346, %v1353
    %v1362 = vmul.f32 %v1347, %v1353
    %v1363 = vsel %vm264, %v1355, 0.0
    %1364 = vadd.xlane.f32.xlu0 %v1363
    %v1365 = vpop.xlane.xlu0 %1364
    %v1366 = vsel %vm264, %v1356, 0.0
    %1367 = vadd.xlane.f32.xlu0 %v1366
    %v1368 = vpop.xlane.xlu0 %1367
    %v1369 = vsel %vm264, %v1357, 0.0
    %1370 = vadd.xlane.f32.xlu0 %v1369
    %v1371 = vpop.xlane.xlu0 %1370
    %v1372 = vsel %vm264, %v1358, 0.0
    %1373 = vadd.xlane.f32.xlu0 %v1372
    %v1374 = vpop.xlane.xlu0 %1373
    %v1375 = vsel %vm264, %v1359, 0.0
    %1376 = vadd.xlane.f32.xlu0 %v1375
    %v1377 = vpop.xlane.xlu0 %1376
    %v1378 = vsel %vm264, %v1360, 0.0
    %1379 = vadd.xlane.f32.xlu0 %v1378
    %v1380 = vpop.xlane.xlu0 %1379
    %v1381 = vsel %vm264, %v1361, 0.0
    %1382 = vadd.xlane.f32.xlu0 %v1381
    %v1383 = vpop.xlane.xlu0 %1382
    %v1384 = vsel %vm264, %v1362, 0.0
    %1385 = vadd.xlane.f32.xlu0 %v1384
    %v1386 = vpop.xlane.xlu0 %1385
    %v1387 = vld [vmem:[#allocation4] sm:$0x1]
    %v1389 = vlaneseq
    %v1390 = vshrl.u32 %v1389, 7
    %v1391 = vsub.s32 0, %v1390
    %v1392 = vrot.slane %v1387, %v1391
    %1393 = vset.pattern.permute.xlu0 0
    %1394 = vperm.xlu0 %1393, %v1392
    %v1395 = vpop.permute.xlu0 %1394
    %v1397 = vadd.f32 %v1365, %v1395
    %v1398 = vadd.f32 %v1368, %v1395
    %v1399 = vadd.f32 %v1371, %v1395
    %v1400 = vadd.f32 %v1374, %v1395
    %v1401 = vadd.f32 %v1377, %v1395
    %v1402 = vadd.f32 %v1380, %v1395
    %v1403 = vadd.f32 %v1383, %v1395
    %v1404 = vadd.f32 %v1386, %v1395
    %v1405 = vxor.u32 %v1397, 2147483648
    %v1406 = vxor.u32 %v1398, 2147483648
    %v1407 = vxor.u32 %v1399, 2147483648
    %v1408 = vxor.u32 %v1400, 2147483648
    %v1409 = vxor.u32 %v1401, 2147483648
    %v1410 = vxor.u32 %v1402, 2147483648
    %v1411 = vxor.u32 %v1403, 2147483648
    %v1412 = vxor.u32 %v1404, 2147483648
    %v1413 = vmul.f32 %v1405, 1.442695
    %v1414 = vpow.pop %v1413
    %v1415 = vmul.f32 %v1406, 1.442695
    %v1416 = vpow.pop %v1415
    %v1417 = vmul.f32 %v1407, 1.442695
    %v1418 = vpow.pop %v1417
    %v1419 = vmul.f32 %v1408, 1.442695
    %v1420 = vpow.pop %v1419
    %v1421 = vmul.f32 %v1409, 1.442695
    %v1422 = vpow.pop %v1421
    %v1423 = vmul.f32 %v1410, 1.442695
    %v1424 = vpow.pop %v1423
    %v1425 = vmul.f32 %v1411, 1.442695
    %v1426 = vpow.pop %v1425
    %v1427 = vmul.f32 %v1412, 1.442695
    %v1428 = vpow.pop %v1427
    %v1429 = vadd.f32 %v1414, 1.0
    %v1430 = vadd.f32 %v1416, 1.0
    %v1431 = vadd.f32 %v1418, 1.0
    %v1432 = vadd.f32 %v1420, 1.0
    %v1433 = vadd.f32 %v1422, 1.0
    %v1434 = vadd.f32 %v1424, 1.0
    %v1435 = vadd.f32 %v1426, 1.0
    %v1436 = vadd.f32 %v1428, 1.0
    %v1437 = vrcp.pop %v1429
    %v1438 = vmul.f32 1.0, %v1437
    %v1439 = vrcp.pop %v1430
    %v1440 = vmul.f32 1.0, %v1439
    %v1441 = vrcp.pop %v1431
    %v1442 = vmul.f32 1.0, %v1441
    %v1443 = vrcp.pop %v1432
    %v1444 = vmul.f32 1.0, %v1443
    %v1445 = vrcp.pop %v1433
    %v1446 = vmul.f32 1.0, %v1445
    %v1447 = vrcp.pop %v1434
    %v1448 = vmul.f32 1.0, %v1447
    %v1449 = vrcp.pop %v1435
    %v1450 = vmul.f32 1.0, %v1449
    %v1451 = vrcp.pop %v1436
    %v1452 = vmul.f32 1.0, %v1451
    %v1461 = vlaneseq
    %v1462 = vand.u32 %v1461, 127
    %v1463 = vlaneseq
    %v1464 = vshrl.u32 %v1463, 7
    %v1465 = vsub.s32 %v1462, %v1464
    %v1466 = vrot.slane %v1438, %v1465
    %v1467 = vlaneseq
    %v1468 = vshrl.u32 %v1467, 7
    %v1469 = vsub.s32 %v1462, %v1468
    %v1470 = vrot.slane %v1440, %v1469
    %v1471 = vlaneseq
    %v1472 = vshrl.u32 %v1471, 7
    %v1473 = vsub.s32 %v1462, %v1472
    %v1474 = vrot.slane %v1442, %v1473
    %v1475 = vlaneseq
    %v1476 = vshrl.u32 %v1475, 7
    %v1477 = vsub.s32 %v1462, %v1476
    %v1478 = vrot.slane %v1444, %v1477
    %v1479 = vlaneseq
    %v1480 = vshrl.u32 %v1479, 7
    %v1481 = vsub.s32 %v1462, %v1480
    %v1482 = vrot.slane %v1446, %v1481
    %v1483 = vlaneseq
    %v1484 = vshrl.u32 %v1483, 7
    %v1485 = vsub.s32 %v1462, %v1484
    %v1486 = vrot.slane %v1448, %v1485
    %v1487 = vlaneseq
    %v1488 = vshrl.u32 %v1487, 7
    %v1489 = vsub.s32 %v1462, %v1488
    %v1490 = vrot.slane %v1450, %v1489
    %v1491 = vlaneseq
    %v1492 = vshrl.u32 %v1491, 7
    %v1493 = vsub.s32 %v1462, %v1492
    %v1494 = vrot.slane %v1452, %v1493
    %vm1495 = vcmask 1041409
    %v1496 = vsel %vm1495, %v1470, %v1466
    %vm1497 = vcmask 1042434
    %v1498 = vsel %vm1497, %v1474, %v1496
    %vm1499 = vcmask 1043459
    %v1500 = vsel %vm1499, %v1478, %v1498
    %vm1501 = vcmask 1044484
    %v1502 = vsel %vm1501, %v1482, %v1500
    %vm1503 = vcmask 1045509
    %v1504 = vsel %vm1503, %v1486, %v1502
    %vm1505 = vcmask 1046534
    %v1506 = vsel %vm1505, %v1490, %v1504
    %vm1507 = vcmask 1047559
    %v1508 = vsel %vm1507, %v1494, %v1506
    %vm1510 = vcmask 64512
    %1511 = vst.msk [vmem:[#allocation8] sm:$0xff] %vm1510, %v1508
    %v1512 = vsel %vm264, %v1225, 0.0
    %1513 = vst [vmem:[#allocation9] sm:$0xff] %v1512
    %1515 = vrot.lane.b32.xlu0 %v1193, 96
    %v1516 = vpop.permute.xlu0 %1515
    %v1518 = vsel %vm264, %v1516, 0.0
    %1519 = vst [vmem:[#allocation11] sm:$0xff] %v1518
    %v1520 = vsel %vm264, %v1336, 0.0
    %s1521 = scalar_lea.vmem [#allocation9], 8
    %1522 = vst [vmem:[%s1521] sm:$0xff] %v1520
    %1524 = vrot.lane.b32.xlu0 %v1327, 96
    %v1525 = vpop.permute.xlu0 %1524
    %v1527 = vsel %vm264, %v1525, 0.0
    %s1528 = scalar_lea.vmem [#allocation11], 8
    %1529 = vst [vmem:[%s1528] sm:$0xff] %v1527
    // Predicated region
    $region30: #{tpu_custom_call.1} parent=1 // pred_check
      _
    $region31: #{tpu_custom_call.1} parent=1 // pred_check_branch
      %1531 = sbr.rel (0) target = $region33
    $region32: #{tpu_custom_call.1} parent=1 // pred_region
      %s1533 = ssub.s32 128, 128
      %1534 = vsyncadd [#allocation7], %s1533
      %s1536 = sshll.u32 [#allocation8], 4
      %s1537 = int_to_ptr.vmem [resolvable:$true] %s1536
      %1539 = dma.vmem_to_hbm [thread:$0]  %s1537, 128, %s6, [#allocation7]
    $region33: #{tpu_custom_call.1} parent=1 // pred_fallthru
      _
    // Predicated region
    $region34: #{tpu_custom_call.1} parent=1 // pred_check
      _
    $region35: #{tpu_custom_call.1} parent=1 // pred_check_branch
      %1541 = sbr.rel (0) target = $region37
    $region36: #{tpu_custom_call.1} parent=1 // pred_region
      %s1543 = ssub.s32 256, 256
      %1544 = vsyncadd [#allocation10], %s1543
      %s1545 = sshll.u32 [#allocation9], 4
      %s1546 = int_to_ptr.vmem [resolvable:$true] %s1545
      %1551 = dma.vmem_to_hbm [thread:$0]  %s1546, 256, %s7, [#allocation10], 128, 128, 8
    $region37: #{tpu_custom_call.1} parent=1 // pred_fallthru
      _
    // Predicated region
    $region38: #{tpu_custom_call.1} parent=1 // pred_check
      _
    $region39: #{tpu_custom_call.1} parent=1 // pred_check_branch
      %1553 = sbr.rel (0) target = $region41
    $region40: #{tpu_custom_call.1} parent=1 // pred_region
      %s1555 = ssub.s32 256, 256
      %1556 = vsyncadd [#allocation10], %s1555
      %s1557 = sshll.u32 [#allocation11], 4
      %s1558 = int_to_ptr.vmem [resolvable:$true] %s1557
      %1563 = dma.vmem_to_hbm [thread:$0]  %s1558, 256, %s8, [#allocation10], 128, 128, 8
    $region41: #{tpu_custom_call.1} parent=1 // pred_fallthru
      _
    // Predicated region
    $region42: #{tpu_custom_call.1} parent=1 // pred_check
      _
    $region43: #{tpu_custom_call.1} parent=1 // pred_check_branch
      %1565 = sbr.rel (0) target = $region45
    $region44: #{tpu_custom_call.1} parent=1 // pred_region
      %1566 = dma.done [#allocation7], 128
    $region45: #{tpu_custom_call.1} parent=1 // pred_fallthru
      _
    // Predicated region
    $region46: #{tpu_custom_call.1} parent=1 // pred_check
      _
    $region47: #{tpu_custom_call.1} parent=1 // pred_check_branch
      %1568 = sbr.rel (0) target = $region49
    $region48: #{tpu_custom_call.1} parent=1 // pred_region
      %1569 = dma.done [#allocation10], 256
    $region49: #{tpu_custom_call.1} parent=1 // pred_fallthru
      _
    // Predicated region
    $region50: #{tpu_custom_call.1} parent=1 // pred_check
      _
    $region51: #{tpu_custom_call.1} parent=1 // pred_check_branch
      %1571 = sbr.rel (0) target = $region53
    $region52: #{tpu_custom_call.1} parent=1 // pred_region
      %1572 = dma.done [#allocation10], 256
    $region53: #{tpu_custom_call.1} parent=1 // pred_fallthru
      _
    %1573 = vsyncpa [#allocation6], 1
    %1574 = vsyncpa [#allocation7], 1
    %1575 = vsyncpa [#allocation10], 1

</llo_original>
